<compile_context>
chip_gen: v6e
topology: v6e:2x2x1
jax: 0.10.0
libtpu: 0.0.40
codegen_flags: <defaults>
</compile_context>

<pallas_src>
import functools

import jax
import jax.numpy as jnp
from jax.experimental import pallas as pl
from jax.experimental.pallas import tpu as pltpu

# ----------------- small synthetic BERT config -----------------
VOCAB       = 100
MAX_POS     = 16
HIDDEN      = 32          # config.dim_model
NUM_HEADS   = 2
HEAD_DIM    = HIDDEN // NUM_HEADS
INTER       = 64
NUM_LAYERS  = 2
NUM_CLASSES = 2
LN_EPS      = 1e-12
CLS_PAD     = 128         # lane-dense padding for the 2-class head
MATMUL_DTYPE = jnp.bfloat16


# ----------------- in-kernel helpers -----------------
def _layernorm(h, g, b):
    mu = jnp.mean(h, axis=-1, keepdims=True)
    var = jnp.mean(jnp.square(h - mu), axis=-1, keepdims=True)
    return (h - mu) * jax.lax.rsqrt(var + LN_EPS) * g + b


# ----------------- fused encoder kernel (one grid step == one layer) -----------------
def _encoder_layer_kernel(x_ref, mask_ref, eg_ref, eb_ref,
                          wqkv_ref, bqkv_ref, wo_ref, bo_ref, g1_ref, b1_ref,
                          wi_ref, bi_ref, wo2_ref, bo2_ref, g2_ref, b2_ref,
                          o_ref, x_sc, *, batch, seq):
    layer = pl.program_id(0)
    bs = batch * seq
    scale = 1.0 / float(HEAD_DIM) ** 0.5

    # Layer 0: embedding LayerNorm seeds the VMEM-resident activation slab.
    @pl.when(layer == 0)
    def _():
        x_sc[...] = _layernorm(x_ref[...], eg_ref[...], eb_ref[...])

    x = x_sc[...]                                            # (B*S, H), f32

    # ---- self-attention: fused QKV matmul, per-head softmax(QK^T)V ----
    qkv = jnp.dot(x.astype(MATMUL_DTYPE), wqkv_ref[...],
                  preferred_element_type=jnp.float32) + bqkv_ref[...]   # (B*S, 3H)
    wo = wo_ref[...]                                         # (H, H) bf16
    mask = mask_ref[...]                                     # (B, 1, S) f32
    attn_out = bo_ref[...]                                   # (1, H) bias, broadcasts
    for h in range(NUM_HEADS):
        q = qkv[:, h * HEAD_DIM:(h + 1) * HEAD_DIM].reshape(batch, seq, HEAD_DIM)
        k = qkv[:, HIDDEN + h * HEAD_DIM:HIDDEN + (h + 1) * HEAD_DIM
                ].reshape(batch, seq, HEAD_DIM)
        v = qkv[:, 2 * HIDDEN + h * HEAD_DIM:2 * HIDDEN + (h + 1) * HEAD_DIM
                ].reshape(batch, seq, HEAD_DIM)
        s = jnp.einsum("bqd,bkd->bqk",
                       q.astype(MATMUL_DTYPE), k.astype(MATMUL_DTYPE),
                       preferred_element_type=jnp.float32) * scale + mask
        s = s - jnp.max(s, axis=-1, keepdims=True)
        p = jnp.exp(s)
        p = p * pl.reciprocal(jnp.sum(p, axis=-1, keepdims=True), approx=True)
        ctx = jnp.einsum("bqk,bkd->bqd",
                         p.astype(MATMUL_DTYPE), v.astype(MATMUL_DTYPE),
                         preferred_element_type=jnp.float32).reshape(bs, HEAD_DIM)
        # merge heads by accumulating ctx_h @ Wo[h-rows] (avoids lane concat)
        attn_out = attn_out + jnp.dot(ctx.astype(MATMUL_DTYPE),
                                      wo[h * HEAD_DIM:(h + 1) * HEAD_DIM, :],
                                      preferred_element_type=jnp.float32)
    x = _layernorm(attn_out + x, g1_ref[...], b1_ref[...])

    # ---- feed-forward ----
    hmid = jnp.dot(x.astype(MATMUL_DTYPE), wi_ref[...],
                   preferred_element_type=jnp.float32) + bi_ref[...]
    # TODO(synk): bert-base-uncased uses exact erf GELU; tanh approximation is
    # used here for guaranteed Mosaic lowering (~1e-3 deviation).
    hmid = jax.nn.gelu(hmid, approximate=True)
    ffn = jnp.dot(hmid.astype(MATMUL_DTYPE), wo2_ref[...],
                  preferred_element_type=jnp.float32) + bo2_ref[...]
    x = _layernorm(ffn + x, g2_ref[...], b2_ref[...])

    x_sc[...] = x

    @pl.when(layer == pl.num_programs(0) - 1)
    def _():
        o_ref[...] = x


# ----------------- fused pooler + classifier kernel (lane-dense output) -----------------
def _pooler_cls_kernel(cls_ref, pw_ref, pb_ref, cw_ref, cb_ref, o_ref):
    pooled = jnp.tanh(
        jnp.dot(cls_ref[...].astype(MATMUL_DTYPE), pw_ref[...],
                preferred_element_type=jnp.float32) + pb_ref[...])
    logits = jnp.dot(pooled.astype(MATMUL_DTYPE), cw_ref[...],
                     preferred_element_type=jnp.float32) + cb_ref[...]
    o_ref[...] = logits.astype(o_ref.dtype)


# ----------------- deterministic parameter init (stacked per-layer weights) -----------------
def init_params(seed=0):
    keys = iter(jax.random.split(jax.random.PRNGKey(seed), 64))

    def nrm(shape):
        return 0.02 * jax.random.normal(next(keys), shape, jnp.float32)

    L = NUM_LAYERS
    params = {
        "word_emb": nrm((VOCAB, HIDDEN)),
        "pos_emb":  nrm((MAX_POS, HIDDEN)),
        "type_emb": nrm((2, HIDDEN)),
        "emb_ln_g": jnp.ones((1, HIDDEN), jnp.float32),
        "emb_ln_b": jnp.zeros((1, HIDDEN), jnp.float32),
        # stacked per-layer weights (layer axis driven by the grid)
        "wqkv": nrm((L, HIDDEN, 3 * HIDDEN)).astype(MATMUL_DTYPE),
        "bqkv": jnp.zeros((L, 1, 3 * HIDDEN), jnp.float32),
        "wo":   nrm((L, HIDDEN, HIDDEN)).astype(MATMUL_DTYPE),
        "bo":   jnp.zeros((L, 1, HIDDEN), jnp.float32),
        "ln1_g": jnp.ones((L, 1, HIDDEN), jnp.float32),
        "ln1_b": jnp.zeros((L, 1, HIDDEN), jnp.float32),
        "wi":   nrm((L, HIDDEN, INTER)).astype(MATMUL_DTYPE),
        "bi":   jnp.zeros((L, 1, INTER), jnp.float32),
        "wo2":  nrm((L, INTER, HIDDEN)).astype(MATMUL_DTYPE),
        "bo2":  jnp.zeros((L, 1, HIDDEN), jnp.float32),
        "ln2_g": jnp.ones((L, 1, HIDDEN), jnp.float32),
        "ln2_b": jnp.zeros((L, 1, HIDDEN), jnp.float32),
        # pooler + 2-class head (head padded to 128 lanes for dense stores)
        "pool_w": nrm((HIDDEN, HIDDEN)).astype(MATMUL_DTYPE),
        "pool_b": jnp.zeros((1, HIDDEN), jnp.float32),
    }
    cls_w = nrm((HIDDEN, NUM_CLASSES))
    params["cls_w_pad"] = jnp.pad(
        cls_w, ((0, 0), (0, CLS_PAD - NUM_CLASSES))).astype(MATMUL_DTYPE)
    params["cls_b_pad"] = jnp.zeros((1, CLS_PAD), jnp.float32)
    return params


# ----------------- forward pass (BertModel.forward) -----------------
def bert_forward(params, input_ids, attention_mask):
    B, S = input_ids.shape
    BS = B * S

    # Embedding gather is plain-JAX glue (pure indexing, no hot-path FLOPs).
    # TODO(synk): token_type_ids hard-coded to type 0 (reference forward passes none).
    emb = (jnp.take(params["word_emb"], input_ids, axis=0)
           + params["pos_emb"][None, :S, :]
           + params["type_emb"][0][None, None, :])
    x0 = emb.reshape(BS, HIDDEN)

    # Extended additive key mask: (1 - mask) * large_negative, shared by all heads.
    mask_add = ((1.0 - attention_mask.astype(jnp.float32)) * (-1e9)).reshape(B, 1, S)

    layer_w = lambda l: (l, 0, 0)      # select layer l's weight slab
    const2 = lambda l: (0, 0)
    const3 = lambda l: (0, 0, 0)

    hidden = pl.pallas_call(
        functools.partial(_encoder_layer_kernel, batch=B, seq=S),
        out_shape=jax.ShapeDtypeStruct((BS, HIDDEN), jnp.float32),
        grid_spec=pltpu.PrefetchScalarGridSpec(
            num_scalar_prefetch=0,
            grid=(NUM_LAYERS,),
            in_specs=[
                pl.BlockSpec((BS, HIDDEN), const2),                      # embeddings
                pl.BlockSpec((B, 1, S), const3),                         # additive mask
                pl.BlockSpec((1, HIDDEN), const2),                       # emb LN gamma
                pl.BlockSpec((1, HIDDEN), const2),                       # emb LN beta
                pl.BlockSpec((None, HIDDEN, 3 * HIDDEN), layer_w),       # wqkv
                pl.BlockSpec((None, 1, 3 * HIDDEN), layer_w),            # bqkv
                pl.BlockSpec((None, HIDDEN, HIDDEN), layer_w),           # wo
                pl.BlockSpec((None, 1, HIDDEN), layer_w),                # bo
                pl.BlockSpec((None, 1, HIDDEN), layer_w),                # ln1 gamma
                pl.BlockSpec((None, 1, HIDDEN), layer_w),                # ln1 beta
                pl.BlockSpec((None, HIDDEN, INTER), layer_w),            # wi
                pl.BlockSpec((None, 1, INTER), layer_w),                 # bi
                pl.BlockSpec((None, INTER, HIDDEN), layer_w),            # wo2
                pl.BlockSpec((None, 1, HIDDEN), layer_w),                # bo2
                pl.BlockSpec((None, 1, HIDDEN), layer_w),                # ln2 gamma
                pl.BlockSpec((None, 1, HIDDEN), layer_w),                # ln2 beta
            ],
            out_specs=pl.BlockSpec((BS, HIDDEN), const2),
            scratch_shapes=[pltpu.VMEM((BS, HIDDEN), jnp.float32)],      # resident x
        ),
        compiler_params=pltpu.CompilerParams(
            dimension_semantics=("arbitrary",)),   # layer axis is a sequential carry
    )(x0, mask_add, params["emb_ln_g"], params["emb_ln_b"],
      params["wqkv"], params["bqkv"], params["wo"], params["bo"],
      params["ln1_g"], params["ln1_b"],
      params["wi"], params["bi"], params["wo2"], params["bo2"],
      params["ln2_g"], params["ln2_b"])

    # Pooler + classifier (single fused kernel, 128-lane padded output).
    cls_tok = hidden.reshape(B, S, HIDDEN)[:, 0, :]                       # (B, H)
    logits_pad = pl.pallas_call(
        _pooler_cls_kernel,
        out_shape=jax.ShapeDtypeStruct((B, CLS_PAD), jnp.float32),
    )(cls_tok, params["pool_w"], params["pool_b"],
      params["cls_w_pad"], params["cls_b_pad"])
    return logits_pad[:, :NUM_CLASSES]


if __name__ == "__main__":
    params = init_params(seed=0)

    key = jax.random.PRNGKey(0)
    k_ids, _ = jax.random.split(key)
    B, S = 2, 8
    input_ids = jax.random.randint(k_ids, (B, S), 0, VOCAB, dtype=jnp.int32)
    attention_mask = jnp.concatenate(
        [jnp.ones((B, 6), jnp.int32), jnp.zeros((B, 2), jnp.int32)], axis=1)

    logits = jax.jit(bert_forward)(params, input_ids, attention_mask)
    logits = jax.block_until_ready(logits)
    assert logits.shape == (B, NUM_CLASSES) and logits.dtype == jnp.float32
    print("KERNEL_OK")
</pallas_src>

<mosaic_0001>
module attributes {stable_mosaic.version = 11 : i64} {
  func.func @_encoder_layer_kernel(%arg0: i32, %arg1: memref<16x32xf32, #tpu.memory_space<vmem>>, %arg2: memref<2x1x8xf32, #tpu.memory_space<vmem>>, %arg3: memref<1x32xf32, #tpu.memory_space<vmem>>, %arg4: memref<1x32xf32, #tpu.memory_space<vmem>>, %arg5: memref<1x32x96xbf16, #tpu.memory_space<vmem>>, %arg6: memref<1x1x96xf32, #tpu.memory_space<vmem>>, %arg7: memref<1x32x32xbf16, #tpu.memory_space<vmem>>, %arg8: memref<1x1x32xf32, #tpu.memory_space<vmem>>, %arg9: memref<1x1x32xf32, #tpu.memory_space<vmem>>, %arg10: memref<1x1x32xf32, #tpu.memory_space<vmem>>, %arg11: memref<1x32x64xbf16, #tpu.memory_space<vmem>>, %arg12: memref<1x1x64xf32, #tpu.memory_space<vmem>>, %arg13: memref<1x64x32xbf16, #tpu.memory_space<vmem>>, %arg14: memref<1x1x32xf32, #tpu.memory_space<vmem>>, %arg15: memref<1x1x32xf32, #tpu.memory_space<vmem>>, %arg16: memref<1x1x32xf32, #tpu.memory_space<vmem>>, %arg17: memref<16x32xf32, #tpu.memory_space<vmem>>, %arg18: memref<16x32xf32, #tpu.memory_space<vmem>>) attributes {dimension_semantics = [#tpu.dimension_semantics<arbitrary>], iteration_bounds = array<i64: 2>, scalar_prefetch = 0 : i64, scratch_operands = 1 : i64, tpu.core_type = #tpu.core_type<tc>, window_params = [{pipeline_mode = #tpu.pipeline_mode<synchronous>, transform_indices = @transform_0, window_bounds = array<i64: 16, 32>}, {pipeline_mode = #tpu.pipeline_mode<synchronous>, transform_indices = @transform_1, window_bounds = array<i64: 2, 1, 8>}, {pipeline_mode = #tpu.pipeline_mode<synchronous>, transform_indices = @transform_2, window_bounds = array<i64: 1, 32>}, {pipeline_mode = #tpu.pipeline_mode<synchronous>, transform_indices = @transform_3, window_bounds = array<i64: 1, 32>}, {transform_indices = @transform_4, window_bounds = array<i64: 1, 32, 96>}, {transform_indices = @transform_5, window_bounds = array<i64: 1, 1, 96>}, {transform_indices = @transform_6, window_bounds = array<i64: 1, 32, 32>}, {transform_indices = @transform_7, window_bounds = array<i64: 1, 1, 32>}, {transform_indices = @transform_8, window_bounds = array<i64: 1, 1, 32>}, {transform_indices = @transform_9, window_bounds = array<i64: 1, 1, 32>}, {transform_indices = @transform_10, window_bounds = array<i64: 1, 32, 64>}, {transform_indices = @transform_11, window_bounds = array<i64: 1, 1, 64>}, {transform_indices = @transform_12, window_bounds = array<i64: 1, 64, 32>}, {transform_indices = @transform_13, window_bounds = array<i64: 1, 1, 32>}, {transform_indices = @transform_14, window_bounds = array<i64: 1, 1, 32>}, {transform_indices = @transform_15, window_bounds = array<i64: 1, 1, 32>}, {pipeline_mode = #tpu.pipeline_mode<synchronous>, transform_indices = @transform_16, window_bounds = array<i64: 16, 32>}]} {
    %c0_i32 = arith.constant 0 : i32
    %0 = arith.cmpi eq, %arg0, %c0_i32 : i32
    %1 = arith.extui %0 : i1 to i32
    %c0_i32_0 = arith.constant 0 : i32
    %2 = arith.cmpi ne, %1, %c0_i32_0 : i32
    scf.if %2 {
      %c0_72 = arith.constant 0 : index
      %c0_73 = arith.constant 0 : index
      %167 = vector.load %arg1[%c0_72, %c0_73] : memref<16x32xf32, #tpu.memory_space<vmem>>, vector<16x32xf32>
      %c0_74 = arith.constant 0 : index
      %c0_75 = arith.constant 0 : index
      %168 = vector.load %arg3[%c0_74, %c0_75] : memref<1x32xf32, #tpu.memory_space<vmem>>, vector<1x32xf32>
      %c0_76 = arith.constant 0 : index
      %c0_77 = arith.constant 0 : index
      %169 = vector.load %arg4[%c0_76, %c0_77] : memref<1x32xf32, #tpu.memory_space<vmem>>, vector<1x32xf32>
      %cst_78 = arith.constant dense<0.000000e+00> : vector<16xf32>
      %170 = vector.multi_reduction <add>, %167, %cst_78 [1] : vector<16x32xf32> to vector<16xf32>
      %171 = vector.shape_cast %170 : vector<16xf32> to vector<16x1xf32>
      %cst_79 = arith.constant 3.200000e+01 : f32
      %172 = vector.broadcast %cst_79 : f32 to vector<16x1xf32>
      %173 = arith.divf %171, %172 : vector<16x1xf32>
      %174 = vector.broadcast %173 : vector<16x1xf32> to vector<16x32xf32>
      %175 = arith.subf %167, %174 : vector<16x32xf32>
      %176 = arith.mulf %175, %175 : vector<16x32xf32>
      %cst_80 = arith.constant dense<0.000000e+00> : vector<16xf32>
      %177 = vector.multi_reduction <add>, %176, %cst_80 [1] : vector<16x32xf32> to vector<16xf32>
      %178 = vector.shape_cast %177 : vector<16xf32> to vector<16x1xf32>
      %cst_81 = arith.constant 3.200000e+01 : f32
      %179 = vector.broadcast %cst_81 : f32 to vector<16x1xf32>
      %180 = arith.divf %178, %179 : vector<16x1xf32>
      %181 = vector.broadcast %173 : vector<16x1xf32> to vector<16x32xf32>
      %182 = arith.subf %167, %181 : vector<16x32xf32>
      %cst_82 = arith.constant 9.99999996E-13 : f32
      %183 = vector.broadcast %cst_82 : f32 to vector<16x1xf32>
      %184 = arith.addf %180, %183 : vector<16x1xf32>
      %185 = math.rsqrt %184 : vector<16x1xf32>
      %186 = vector.broadcast %185 : vector<16x1xf32> to vector<16x32xf32>
      %187 = arith.mulf %182, %186 : vector<16x32xf32>
      %188 = vector.broadcast %168 : vector<1x32xf32> to vector<16x32xf32>
      %189 = arith.mulf %187, %188 : vector<16x32xf32>
      %190 = vector.broadcast %169 : vector<1x32xf32> to vector<16x32xf32>
      %191 = arith.addf %189, %190 : vector<16x32xf32>
      %c0_83 = arith.constant 0 : index
      %c0_84 = arith.constant 0 : index
      %192 = vector.load %arg18[%c0_83, %c0_84] : memref<16x32xf32, #tpu.memory_space<vmem>>, vector<16x32xf32>
      tpu.vector_store %arg18[%c0_83, %c0_84], %191 {strides = array<i32>} : memref<16x32xf32, #tpu.memory_space<vmem>>, vector<16x32xf32>,
    } else {
    }
    %c0 = arith.constant 0 : index
    %c0_1 = arith.constant 0 : index
    %3 = vector.load %arg18[%c0, %c0_1] : memref<16x32xf32, #tpu.memory_space<vmem>>, vector<16x32xf32>
    %4 = arith.truncf %3 : vector<16x32xf32> to vector<16x32xbf16>
    %c0_2 = arith.constant 0 : index
    %c0_3 = arith.constant 0 : index
    %c0_4 = arith.constant 0 : index
    %5 = vector.load %arg5[%c0_2, %c0_3, %c0_4] : memref<1x32x96xbf16, #tpu.memory_space<vmem>>, vector<1x32x96xbf16>
    %6 = vector.shape_cast %5 : vector<1x32x96xbf16> to vector<32x96xbf16>
    %cst = arith.constant dense<0.000000e+00> : vector<16x96xf32>
    %7 = tpu.matmul %4, %6, %cst {dimension_numbers = #tpu.dot_dimension_numbers<[1], [0], [0], [1], [0, 0, 1, 1], [], []>} : vector<16x32xbf16>, vector<32x96xbf16>, vector<16x96xf32> -> vector<16x96xf32>
    %c0_5 = arith.constant 0 : index
    %c0_6 = arith.constant 0 : index
    %c0_7 = arith.constant 0 : index
    %8 = vector.load %arg6[%c0_5, %c0_6, %c0_7] : memref<1x1x96xf32, #tpu.memory_space<vmem>>, vector<1x1x96xf32>
    %9 = vector.shape_cast %8 : vector<1x1x96xf32> to vector<1x96xf32>
    %10 = vector.broadcast %9 : vector<1x96xf32> to vector<16x96xf32>
    %11 = arith.addf %7, %10 : vector<16x96xf32>
    %c0_8 = arith.constant 0 : index
    %c0_9 = arith.constant 0 : index
    %c0_10 = arith.constant 0 : index
    %12 = vector.load %arg7[%c0_8, %c0_9, %c0_10] : memref<1x32x32xbf16, #tpu.memory_space<vmem>>, vector<1x32x32xbf16>
    %13 = vector.shape_cast %12 : vector<1x32x32xbf16> to vector<32x32xbf16>
    %c0_11 = arith.constant 0 : index
    %c0_12 = arith.constant 0 : index
    %c0_13 = arith.constant 0 : index
    %14 = vector.load %arg2[%c0_11, %c0_12, %c0_13] : memref<2x1x8xf32, #tpu.memory_space<vmem>>, vector<2x1x8xf32>
    %c0_14 = arith.constant 0 : index
    %c0_15 = arith.constant 0 : index
    %c0_16 = arith.constant 0 : index
    %15 = vector.load %arg8[%c0_14, %c0_15, %c0_16] : memref<1x1x32xf32, #tpu.memory_space<vmem>>, vector<1x1x32xf32>
    %16 = vector.shape_cast %15 : vector<1x1x32xf32> to vector<1x32xf32>
    %17 = vector.extract_strided_slice %11 {offsets = [0, 0], sizes = [16, 16], strides = [1, 1]} : vector<16x96xf32> to vector<16x16xf32>
    %18 = vector.shape_cast %17 : vector<16x16xf32> to vector<2x8x16xf32>
    %19 = vector.extract_strided_slice %11 {offsets = [0, 32], sizes = [16, 16], strides = [1, 1]} : vector<16x96xf32> to vector<16x16xf32>
    %20 = vector.shape_cast %19 : vector<16x16xf32> to vector<2x8x16xf32>
    %21 = vector.extract_strided_slice %11 {offsets = [0, 64], sizes = [16, 16], strides = [1, 1]} : vector<16x96xf32> to vector<16x16xf32>
    %22 = vector.shape_cast %21 : vector<16x16xf32> to vector<2x8x16xf32>
    %23 = arith.truncf %18 : vector<2x8x16xf32> to vector<2x8x16xbf16>
    %24 = arith.truncf %20 : vector<2x8x16xf32> to vector<2x8x16xbf16>
    "tpu.trace_start"() <{level = 10 : i32, message = "bqd,bkd->bqk"}> : () -> ()
    %cst_17 = arith.constant dense<0.000000e+00> : vector<2x8x8xf32>
    %25 = tpu.matmul %23, %24, %cst_17 {dimension_numbers = #tpu.dot_dimension_numbers<[2], [2], [1], [1], [0, 0, 0, 1, 1, 1], [0], [0]>} : vector<2x8x16xbf16>, vector<2x8x16xbf16>, vector<2x8x8xf32> -> vector<2x8x8xf32>
    "tpu.trace_stop"() : () -> ()
    %cst_18 = arith.constant 2.500000e-01 : f32
    %26 = vector.broadcast %cst_18 : f32 to vector<2x8x8xf32>
    %27 = arith.mulf %25, %26 : vector<2x8x8xf32>
    %28 = vector.broadcast %14 : vector<2x1x8xf32> to vector<2x8x8xf32>
    %29 = arith.addf %27, %28 : vector<2x8x8xf32>
    %cst_19 = arith.constant dense<0xFF800000> : vector<2x8xf32>
    %30 = vector.multi_reduction <maximumf>, %29, %cst_19 [2] : vector<2x8x8xf32> to vector<2x8xf32>
    %31 = vector.shape_cast %30 : vector<2x8xf32> to vector<2x8x1xf32>
    %32 = vector.broadcast %31 : vector<2x8x1xf32> to vector<2x8x8xf32>
    %33 = arith.subf %29, %32 : vector<2x8x8xf32>
    %34 = math.exp %33 : vector<2x8x8xf32>
    %cst_20 = arith.constant dense<0.000000e+00> : vector<2x8xf32>
    %35 = vector.multi_reduction <add>, %34, %cst_20 [2] : vector<2x8x8xf32> to vector<2x8xf32>
    %36 = vector.shape_cast %35 : vector<2x8xf32> to vector<2x8x1xf32>
    %37 = tpu.reciprocal %36 {approx = true} : vector<2x8x1xf32> -> vector<2x8x1xf32>
    %38 = vector.broadcast %37 : vector<2x8x1xf32> to vector<2x8x8xf32>
    %39 = arith.mulf %34, %38 : vector<2x8x8xf32>
    %40 = arith.truncf %39 : vector<2x8x8xf32> to vector<2x8x8xbf16>
    %41 = arith.truncf %22 : vector<2x8x16xf32> to vector<2x8x16xbf16>
    "tpu.trace_start"() <{level = 10 : i32, message = "bqk,bkd->bqd"}> : () -> ()
    %cst_21 = arith.constant dense<0.000000e+00> : vector<2x8x16xf32>
    %42 = tpu.matmul %40, %41, %cst_21 {dimension_numbers = #tpu.dot_dimension_numbers<[2], [1], [1], [2], [0, 0, 0, 1, 1, 2], [0], [0]>} : vector<2x8x8xbf16>, vector<2x8x16xbf16>, vector<2x8x16xf32> -> vector<2x8x16xf32>
    "tpu.trace_stop"() : () -> ()
    %43 = vector.shape_cast %42 : vector<2x8x16xf32> to vector<16x16xf32>
    %44 = arith.truncf %43 : vector<16x16xf32> to vector<16x16xbf16>
    %45 = vector.extract_strided_slice %13 {offsets = [0, 0], sizes = [16, 32], strides = [1, 1]} : vector<32x32xbf16> to vector<16x32xbf16>
    %cst_22 = arith.constant dense<0.000000e+00> : vector<16x32xf32>
    %46 = tpu.matmul %44, %45, %cst_22 {dimension_numbers = #tpu.dot_dimension_numbers<[1], [0], [0], [1], [0, 0, 1, 1], [], []>} : vector<16x16xbf16>, vector<16x32xbf16>, vector<16x32xf32> -> vector<16x32xf32>
    %47 = vector.broadcast %16 : vector<1x32xf32> to vector<16x32xf32>
    %48 = arith.addf %47, %46 : vector<16x32xf32>
    %49 = vector.extract_strided_slice %11 {offsets = [0, 16], sizes = [16, 16], strides = [1, 1]} : vector<16x96xf32> to vector<16x16xf32>
    %50 = vector.shape_cast %49 : vector<16x16xf32> to vector<2x8x16xf32>
    %51 = vector.extract_strided_slice %11 {offsets = [0, 48], sizes = [16, 16], strides = [1, 1]} : vector<16x96xf32> to vector<16x16xf32>
    %52 = vector.shape_cast %51 : vector<16x16xf32> to vector<2x8x16xf32>
    %53 = vector.extract_strided_slice %11 {offsets = [0, 80], sizes = [16, 16], strides = [1, 1]} : vector<16x96xf32> to vector<16x16xf32>
    %54 = vector.shape_cast %53 : vector<16x16xf32> to vector<2x8x16xf32>
    %55 = arith.truncf %50 : vector<2x8x16xf32> to vector<2x8x16xbf16>
    %56 = arith.truncf %52 : vector<2x8x16xf32> to vector<2x8x16xbf16>
    "tpu.trace_start"() <{level = 10 : i32, message = "bqd,bkd->bqk"}> : () -> ()
    %cst_23 = arith.constant dense<0.000000e+00> : vector<2x8x8xf32>
    %57 = tpu.matmul %55, %56, %cst_23 {dimension_numbers = #tpu.dot_dimension_numbers<[2], [2], [1], [1], [0, 0, 0, 1, 1, 1], [0], [0]>} : vector<2x8x16xbf16>, vector<2x8x16xbf16>, vector<2x8x8xf32> -> vector<2x8x8xf32>
    "tpu.trace_stop"() : () -> ()
    %cst_24 = arith.constant 2.500000e-01 : f32
    %58 = vector.broadcast %cst_24 : f32 to vector<2x8x8xf32>
    %59 = arith.mulf %57, %58 : vector<2x8x8xf32>
    %60 = vector.broadcast %14 : vector<2x1x8xf32> to vector<2x8x8xf32>
    %61 = arith.addf %59, %60 : vector<2x8x8xf32>
    %cst_25 = arith.constant dense<0xFF800000> : vector<2x8xf32>
    %62 = vector.multi_reduction <maximumf>, %61, %cst_25 [2] : vector<2x8x8xf32> to vector<2x8xf32>
    %63 = vector.shape_cast %62 : vector<2x8xf32> to vector<2x8x1xf32>
    %64 = vector.broadcast %63 : vector<2x8x1xf32> to vector<2x8x8xf32>
    %65 = arith.subf %61, %64 : vector<2x8x8xf32>
    %66 = math.exp %65 : vector<2x8x8xf32>
    %cst_26 = arith.constant dense<0.000000e+00> : vector<2x8xf32>
    %67 = vector.multi_reduction <add>, %66, %cst_26 [2] : vector<2x8x8xf32> to vector<2x8xf32>
    %68 = vector.shape_cast %67 : vector<2x8xf32> to vector<2x8x1xf32>
    %69 = tpu.reciprocal %68 {approx = true} : vector<2x8x1xf32> -> vector<2x8x1xf32>
    %70 = vector.broadcast %69 : vector<2x8x1xf32> to vector<2x8x8xf32>
    %71 = arith.mulf %66, %70 : vector<2x8x8xf32>
    %72 = arith.truncf %71 : vector<2x8x8xf32> to vector<2x8x8xbf16>
    %73 = arith.truncf %54 : vector<2x8x16xf32> to vector<2x8x16xbf16>
    "tpu.trace_start"() <{level = 10 : i32, message = "bqk,bkd->bqd"}> : () -> ()
    %cst_27 = arith.constant dense<0.000000e+00> : vector<2x8x16xf32>
    %74 = tpu.matmul %72, %73, %cst_27 {dimension_numbers = #tpu.dot_dimension_numbers<[2], [1], [1], [2], [0, 0, 0, 1, 1, 2], [0], [0]>} : vector<2x8x8xbf16>, vector<2x8x16xbf16>, vector<2x8x16xf32> -> vector<2x8x16xf32>
    "tpu.trace_stop"() : () -> ()
    %75 = vector.shape_cast %74 : vector<2x8x16xf32> to vector<16x16xf32>
    %76 = arith.truncf %75 : vector<16x16xf32> to vector<16x16xbf16>
    %77 = vector.extract_strided_slice %13 {offsets = [16, 0], sizes = [16, 32], strides = [1, 1]} : vector<32x32xbf16> to vector<16x32xbf16>
    %cst_28 = arith.constant dense<0.000000e+00> : vector<16x32xf32>
    %78 = tpu.matmul %76, %77, %cst_28 {dimension_numbers = #tpu.dot_dimension_numbers<[1], [0], [0], [1], [0, 0, 1, 1], [], []>} : vector<16x16xbf16>, vector<16x32xbf16>, vector<16x32xf32> -> vector<16x32xf32>
    %79 = arith.addf %48, %78 : vector<16x32xf32>
    %80 = arith.addf %79, %3 : vector<16x32xf32>
    %c0_29 = arith.constant 0 : index
    %c0_30 = arith.constant 0 : index
    %c0_31 = arith.constant 0 : index
    %81 = vector.load %arg9[%c0_29, %c0_30, %c0_31] : memref<1x1x32xf32, #tpu.memory_space<vmem>>, vector<1x1x32xf32>
    %82 = vector.shape_cast %81 : vector<1x1x32xf32> to vector<1x32xf32>
    %c0_32 = arith.constant 0 : index
    %c0_33 = arith.constant 0 : index
    %c0_34 = arith.constant 0 : index
    %83 = vector.load %arg10[%c0_32, %c0_33, %c0_34] : memref<1x1x32xf32, #tpu.memory_space<vmem>>, vector<1x1x32xf32>
    %84 = vector.shape_cast %83 : vector<1x1x32xf32> to vector<1x32xf32>
    %cst_35 = arith.constant dense<0.000000e+00> : vector<16xf32>
    %85 = vector.multi_reduction <add>, %80, %cst_35 [1] : vector<16x32xf32> to vector<16xf32>
    %86 = vector.shape_cast %85 : vector<16xf32> to vector<16x1xf32>
    %cst_36 = arith.constant 3.200000e+01 : f32
    %87 = vector.broadcast %cst_36 : f32 to vector<16x1xf32>
    %88 = arith.divf %86, %87 : vector<16x1xf32>
    %89 = vector.broadcast %88 : vector<16x1xf32> to vector<16x32xf32>
    %90 = arith.subf %80, %89 : vector<16x32xf32>
    %91 = arith.mulf %90, %90 : vector<16x32xf32>
    %cst_37 = arith.constant dense<0.000000e+00> : vector<16xf32>
    %92 = vector.multi_reduction <add>, %91, %cst_37 [1] : vector<16x32xf32> to vector<16xf32>
    %93 = vector.shape_cast %92 : vector<16xf32> to vector<16x1xf32>
    %cst_38 = arith.constant 3.200000e+01 : f32
    %94 = vector.broadcast %cst_38 : f32 to vector<16x1xf32>
    %95 = arith.divf %93, %94 : vector<16x1xf32>
    %96 = vector.broadcast %88 : vector<16x1xf32> to vector<16x32xf32>
    %97 = arith.subf %80, %96 : vector<16x32xf32>
    %cst_39 = arith.constant 9.99999996E-13 : f32
    %98 = vector.broadcast %cst_39 : f32 to vector<16x1xf32>
    %99 = arith.addf %95, %98 : vector<16x1xf32>
    %100 = math.rsqrt %99 : vector<16x1xf32>
    %101 = vector.broadcast %100 : vector<16x1xf32> to vector<16x32xf32>
    %102 = arith.mulf %97, %101 : vector<16x32xf32>
    %103 = vector.broadcast %82 : vector<1x32xf32> to vector<16x32xf32>
    %104 = arith.mulf %102, %103 : vector<16x32xf32>
    %105 = vector.broadcast %84 : vector<1x32xf32> to vector<16x32xf32>
    %106 = arith.addf %104, %105 : vector<16x32xf32>
    %107 = arith.truncf %106 : vector<16x32xf32> to vector<16x32xbf16>
    %c0_40 = arith.constant 0 : index
    %c0_41 = arith.constant 0 : index
    %c0_42 = arith.constant 0 : index
    %108 = vector.load %arg11[%c0_40, %c0_41, %c0_42] : memref<1x32x64xbf16, #tpu.memory_space<vmem>>, vector<1x32x64xbf16>
    %109 = vector.shape_cast %108 : vector<1x32x64xbf16> to vector<32x64xbf16>
    %cst_43 = arith.constant dense<0.000000e+00> : vector<16x64xf32>
    %110 = tpu.matmul %107, %109, %cst_43 {dimension_numbers = #tpu.dot_dimension_numbers<[1], [0], [0], [1], [0, 0, 1, 1], [], []>} : vector<16x32xbf16>, vector<32x64xbf16>, vector<16x64xf32> -> vector<16x64xf32>
    %c0_44 = arith.constant 0 : index
    %c0_45 = arith.constant 0 : index
    %c0_46 = arith.constant 0 : index
    %111 = vector.load %arg12[%c0_44, %c0_45, %c0_46] : memref<1x1x64xf32, #tpu.memory_space<vmem>>, vector<1x1x64xf32>
    %112 = vector.shape_cast %111 : vector<1x1x64xf32> to vector<1x64xf32>
    %113 = vector.broadcast %112 : vector<1x64xf32> to vector<16x64xf32>
    %114 = arith.addf %110, %113 : vector<16x64xf32>
    %115 = arith.mulf %114, %114 : vector<16x64xf32>
    %116 = arith.mulf %114, %115 : vector<16x64xf32>
    %cst_47 = arith.constant 4.471500e-02 : f32
    %117 = vector.broadcast %cst_47 : f32 to vector<16x64xf32>
    %118 = arith.mulf %117, %116 : vector<16x64xf32>
    %119 = arith.addf %114, %118 : vector<16x64xf32>
    %cst_48 = arith.constant 0.797884583 : f32
    %120 = vector.broadcast %cst_48 : f32 to vector<16x64xf32>
    %121 = arith.mulf %120, %119 : vector<16x64xf32>
    %122 = math.tanh %121 : vector<16x64xf32>
    %cst_49 = arith.constant 1.000000e+00 : f32
    %123 = vector.broadcast %cst_49 : f32 to vector<16x64xf32>
    %124 = arith.addf %123, %122 : vector<16x64xf32>
    %cst_50 = arith.constant 5.000000e-01 : f32
    %125 = vector.broadcast %cst_50 : f32 to vector<16x64xf32>
    %126 = arith.mulf %125, %124 : vector<16x64xf32>
    %127 = arith.mulf %114, %126 : vector<16x64xf32>
    %128 = arith.truncf %127 : vector<16x64xf32> to vector<16x64xbf16>
    %c0_51 = arith.constant 0 : index
    %c0_52 = arith.constant 0 : index
    %c0_53 = arith.constant 0 : index
    %129 = vector.load %arg13[%c0_51, %c0_52, %c0_53] : memref<1x64x32xbf16, #tpu.memory_space<vmem>>, vector<1x64x32xbf16>
    %130 = vector.shape_cast %129 : vector<1x64x32xbf16> to vector<64x32xbf16>
    %cst_54 = arith.constant dense<0.000000e+00> : vector<16x32xf32>
    %131 = tpu.matmul %128, %130, %cst_54 {dimension_numbers = #tpu.dot_dimension_numbers<[1], [0], [0], [1], [0, 0, 1, 1], [], []>} : vector<16x64xbf16>, vector<64x32xbf16>, vector<16x32xf32> -> vector<16x32xf32>
    %c0_55 = arith.constant 0 : index
    %c0_56 = arith.constant 0 : index
    %c0_57 = arith.constant 0 : index
    %132 = vector.load %arg14[%c0_55, %c0_56, %c0_57] : memref<1x1x32xf32, #tpu.memory_space<vmem>>, vector<1x1x32xf32>
    %133 = vector.shape_cast %132 : vector<1x1x32xf32> to vector<1x32xf32>
    %134 = vector.broadcast %133 : vector<1x32xf32> to vector<16x32xf32>
    %135 = arith.addf %131, %134 : vector<16x32xf32>
    %136 = arith.addf %135, %106 : vector<16x32xf32>
    %c0_58 = arith.constant 0 : index
    %c0_59 = arith.constant 0 : index
    %c0_60 = arith.constant 0 : index
    %137 = vector.load %arg15[%c0_58, %c0_59, %c0_60] : memref<1x1x32xf32, #tpu.memory_space<vmem>>, vector<1x1x32xf32>
    %138 = vector.shape_cast %137 : vector<1x1x32xf32> to vector<1x32xf32>
    %c0_61 = arith.constant 0 : index
    %c0_62 = arith.constant 0 : index
    %c0_63 = arith.constant 0 : index
    %139 = vector.load %arg16[%c0_61, %c0_62, %c0_63] : memref<1x1x32xf32, #tpu.memory_space<vmem>>, vector<1x1x32xf32>
    %140 = vector.shape_cast %139 : vector<1x1x32xf32> to vector<1x32xf32>
    %cst_64 = arith.constant dense<0.000000e+00> : vector<16xf32>
    %141 = vector.multi_reduction <add>, %136, %cst_64 [1] : vector<16x32xf32> to vector<16xf32>
    %142 = vector.shape_cast %141 : vector<16xf32> to vector<16x1xf32>
    %cst_65 = arith.constant 3.200000e+01 : f32
    %143 = vector.broadcast %cst_65 : f32 to vector<16x1xf32>
    %144 = arith.divf %142, %143 : vector<16x1xf32>
    %145 = vector.broadcast %144 : vector<16x1xf32> to vector<16x32xf32>
    %146 = arith.subf %136, %145 : vector<16x32xf32>
    %147 = arith.mulf %146, %146 : vector<16x32xf32>
    %cst_66 = arith.constant dense<0.000000e+00> : vector<16xf32>
    %148 = vector.multi_reduction <add>, %147, %cst_66 [1] : vector<16x32xf32> to vector<16xf32>
    %149 = vector.shape_cast %148 : vector<16xf32> to vector<16x1xf32>
    %cst_67 = arith.constant 3.200000e+01 : f32
    %150 = vector.broadcast %cst_67 : f32 to vector<16x1xf32>
    %151 = arith.divf %149, %150 : vector<16x1xf32>
    %152 = vector.broadcast %144 : vector<16x1xf32> to vector<16x32xf32>
    %153 = arith.subf %136, %152 : vector<16x32xf32>
    %cst_68 = arith.constant 9.99999996E-13 : f32
    %154 = vector.broadcast %cst_68 : f32 to vector<16x1xf32>
    %155 = arith.addf %151, %154 : vector<16x1xf32>
    %156 = math.rsqrt %155 : vector<16x1xf32>
    %157 = vector.broadcast %156 : vector<16x1xf32> to vector<16x32xf32>
    %158 = arith.mulf %153, %157 : vector<16x32xf32>
    %159 = vector.broadcast %138 : vector<1x32xf32> to vector<16x32xf32>
    %160 = arith.mulf %158, %159 : vector<16x32xf32>
    %161 = vector.broadcast %140 : vector<1x32xf32> to vector<16x32xf32>
    %162 = arith.addf %160, %161 : vector<16x32xf32>
    %c0_69 = arith.constant 0 : index
    %c0_70 = arith.constant 0 : index
    %163 = vector.load %arg18[%c0_69, %c0_70] : memref<16x32xf32, #tpu.memory_space<vmem>>, vector<16x32xf32>
    tpu.vector_store %arg18[%c0_69, %c0_70], %162 {strides = array<i32>} : memref<16x32xf32, #tpu.memory_space<vmem>>, vector<16x32xf32>,
    %c1_i32 = arith.constant 1 : i32
    %164 = arith.cmpi eq, %arg0, %c1_i32 : i32
    %165 = arith.extui %164 : i1 to i32
    %c0_i32_71 = arith.constant 0 : i32
    %166 = arith.cmpi ne, %165, %c0_i32_71 : i32
    scf.if %166 {
      %c0_72 = arith.constant 0 : index
      %c0_73 = arith.constant 0 : index
      %167 = vector.load %arg17[%c0_72, %c0_73] : memref<16x32xf32, #tpu.memory_space<vmem>>, vector<16x32xf32>
      tpu.vector_store %arg17[%c0_72, %c0_73], %162 {strides = array<i32>} : memref<16x32xf32, #tpu.memory_space<vmem>>, vector<16x32xf32>,
    } else {
    }
    return
  }
  func.func @transform_0(%arg0: i32) -> (i32, i32) {
    %c0_i32 = arith.constant 0 : i32
    %c0_i32_0 = arith.constant 0 : i32
    %c0_i32_1 = arith.constant 0 : i32
    return %c0_i32, %c0_i32_0 : i32, i32
  }
  func.func @transform_1(%arg0: i32) -> (i32, i32, i32) {
    %c0_i32 = arith.constant 0 : i32
    %c0_i32_0 = arith.constant 0 : i32
    %c0_i32_1 = arith.constant 0 : i32
    %c0_i32_2 = arith.constant 0 : i32
    return %c0_i32, %c0_i32_0, %c0_i32_1 : i32, i32, i32
  }
  func.func @transform_2(%arg0: i32) -> (i32, i32) {
    %c0_i32 = arith.constant 0 : i32
    %c0_i32_0 = arith.constant 0 : i32
    %c0_i32_1 = arith.constant 0 : i32
    return %c0_i32, %c0_i32_0 : i32, i32
  }
  func.func @transform_3(%arg0: i32) -> (i32, i32) {
    %c0_i32 = arith.constant 0 : i32
    %c0_i32_0 = arith.constant 0 : i32
    %c0_i32_1 = arith.constant 0 : i32
    return %c0_i32, %c0_i32_0 : i32, i32
  }
  func.func @transform_4(%arg0: i32) -> (i32, i32, i32) {
    %c0_i32 = arith.constant 0 : i32
    %c0_i32_0 = arith.constant 0 : i32
    %c0_i32_1 = arith.constant 0 : i32
    return %arg0, %c0_i32, %c0_i32_0 : i32, i32, i32
  }
  func.func @transform_5(%arg0: i32) -> (i32, i32, i32) {
    %c0_i32 = arith.constant 0 : i32
    %c0_i32_0 = arith.constant 0 : i32
    %c0_i32_1 = arith.constant 0 : i32
    return %arg0, %c0_i32, %c0_i32_0 : i32, i32, i32
  }
  func.func @transform_6(%arg0: i32) -> (i32, i32, i32) {
    %c0_i32 = arith.constant 0 : i32
    %c0_i32_0 = arith.constant 0 : i32
    %c0_i32_1 = arith.constant 0 : i32
    return %arg0, %c0_i32, %c0_i32_0 : i32, i32, i32
  }
  func.func @transform_7(%arg0: i32) -> (i32, i32, i32) {
    %c0_i32 = arith.constant 0 : i32
    %c0_i32_0 = arith.constant 0 : i32
    %c0_i32_1 = arith.constant 0 : i32
    return %arg0, %c0_i32, %c0_i32_0 : i32, i32, i32
  }
  func.func @transform_8(%arg0: i32) -> (i32, i32, i32) {
    %c0_i32 = arith.constant 0 : i32
    %c0_i32_0 = arith.constant 0 : i32
    %c0_i32_1 = arith.constant 0 : i32
    return %arg0, %c0_i32, %c0_i32_0 : i32, i32, i32
  }
  func.func @transform_9(%arg0: i32) -> (i32, i32, i32) {
    %c0_i32 = arith.constant 0 : i32
    %c0_i32_0 = arith.constant 0 : i32
    %c0_i32_1 = arith.constant 0 : i32
    return %arg0, %c0_i32, %c0_i32_0 : i32, i32, i32
  }
  func.func @transform_10(%arg0: i32) -> (i32, i32, i32) {
    %c0_i32 = arith.constant 0 : i32
    %c0_i32_0 = arith.constant 0 : i32
    %c0_i32_1 = arith.constant 0 : i32
    return %arg0, %c0_i32, %c0_i32_0 : i32, i32, i32
  }
  func.func @transform_11(%arg0: i32) -> (i32, i32, i32) {
    %c0_i32 = arith.constant 0 : i32
    %c0_i32_0 = arith.constant 0 : i32
    %c0_i32_1 = arith.constant 0 : i32
    return %arg0, %c0_i32, %c0_i32_0 : i32, i32, i32
  }
  func.func @transform_12(%arg0: i32) -> (i32, i32, i32) {
    %c0_i32 = arith.constant 0 : i32
    %c0_i32_0 = arith.constant 0 : i32
    %c0_i32_1 = arith.constant 0 : i32
    return %arg0, %c0_i32, %c0_i32_0 : i32, i32, i32
  }
  func.func @transform_13(%arg0: i32) -> (i32, i32, i32) {
    %c0_i32 = arith.constant 0 : i32
    %c0_i32_0 = arith.constant 0 : i32
    %c0_i32_1 = arith.constant 0 : i32
    return %arg0, %c0_i32, %c0_i32_0 : i32, i32, i32
  }
  func.func @transform_14(%arg0: i32) -> (i32, i32, i32) {
    %c0_i32 = arith.constant 0 : i32
    %c0_i32_0 = arith.constant 0 : i32
    %c0_i32_1 = arith.constant 0 : i32
    return %arg0, %c0_i32, %c0_i32_0 : i32, i32, i32
  }
  func.func @transform_15(%arg0: i32) -> (i32, i32, i32) {
    %c0_i32 = arith.constant 0 : i32
    %c0_i32_0 = arith.constant 0 : i32
    %c0_i32_1 = arith.constant 0 : i32
    return %arg0, %c0_i32, %c0_i32_0 : i32, i32, i32
  }
  func.func @transform_16(%arg0: i32) -> (i32, i32) {
    %c0_i32 = arith.constant 0 : i32
    %c0_i32_0 = arith.constant 0 : i32
    %c0_i32_1 = arith.constant 0 : i32
    return %c0_i32, %c0_i32_0 : i32, i32
  }
}

module attributes {stable_mosaic.version = 11 : i64} {
  func.func @_pooler_cls_kernel(%arg0: memref<2x32xf32, #tpu.memory_space<vmem>>, %arg1: memref<32x32xbf16, #tpu.memory_space<vmem>>, %arg2: memref<1x32xf32, #tpu.memory_space<vmem>>, %arg3: memref<32x128xbf16, #tpu.memory_space<vmem>>, %arg4: memref<1x128xf32, #tpu.memory_space<vmem>>, %arg5: memref<2x128xf32, #tpu.memory_space<vmem>>) attributes {dimension_semantics = [], scalar_prefetch = 0 : i64, scratch_operands = 0 : i64, tpu.core_type = #tpu.core_type<tc>} {
    %c0 = arith.constant 0 : index
    %c0_0 = arith.constant 0 : index
    %0 = vector.load %arg0[%c0, %c0_0] : memref<2x32xf32, #tpu.memory_space<vmem>>, vector<2x32xf32>
    %1 = arith.truncf %0 : vector<2x32xf32> to vector<2x32xbf16>
    %c0_1 = arith.constant 0 : index
    %c0_2 = arith.constant 0 : index
    %2 = vector.load %arg1[%c0_1, %c0_2] : memref<32x32xbf16, #tpu.memory_space<vmem>>, vector<32x32xbf16>
    %cst = arith.constant dense<0.000000e+00> : vector<2x32xf32>
    %3 = tpu.matmul %1, %2, %cst {dimension_numbers = #tpu.dot_dimension_numbers<[1], [0], [0], [1], [0, 0, 1, 1], [], []>} : vector<2x32xbf16>, vector<32x32xbf16>, vector<2x32xf32> -> vector<2x32xf32>
    %c0_3 = arith.constant 0 : index
    %c0_4 = arith.constant 0 : index
    %4 = vector.load %arg2[%c0_3, %c0_4] : memref<1x32xf32, #tpu.memory_space<vmem>>, vector<1x32xf32>
    %5 = vector.broadcast %4 : vector<1x32xf32> to vector<2x32xf32>
    %6 = arith.addf %3, %5 : vector<2x32xf32>
    %7 = math.tanh %6 : vector<2x32xf32>
    %8 = arith.truncf %7 : vector<2x32xf32> to vector<2x32xbf16>
    %c0_5 = arith.constant 0 : index
    %c0_6 = arith.constant 0 : index
    %9 = vector.load %arg3[%c0_5, %c0_6] : memref<32x128xbf16, #tpu.memory_space<vmem>>, vector<32x128xbf16>
    %cst_7 = arith.constant dense<0.000000e+00> : vector<2x128xf32>
    %10 = tpu.matmul %8, %9, %cst_7 {dimension_numbers = #tpu.dot_dimension_numbers<[1], [0], [0], [1], [0, 0, 1, 1], [], []>} : vector<2x32xbf16>, vector<32x128xbf16>, vector<2x128xf32> -> vector<2x128xf32>
    %c0_8 = arith.constant 0 : index
    %c0_9 = arith.constant 0 : index
    %11 = vector.load %arg4[%c0_8, %c0_9] : memref<1x128xf32, #tpu.memory_space<vmem>>, vector<1x128xf32>
    %12 = vector.broadcast %11 : vector<1x128xf32> to vector<2x128xf32>
    %13 = arith.addf %10, %12 : vector<2x128xf32>
    %c0_10 = arith.constant 0 : index
    %c0_11 = arith.constant 0 : index
    %14 = vector.load %arg5[%c0_10, %c0_11] : memref<2x128xf32, #tpu.memory_space<vmem>>, vector<2x128xf32>
    tpu.vector_store %arg5[%c0_10, %c0_11], %13 {strides = array<i32>} : memref<2x128xf32, #tpu.memory_space<vmem>>, vector<2x128xf32>,
    return
  }
}

</mosaic_0001>

<llo_original>
// kernel: bert_forward.3
$region0: #{bert_forward.3}
  #allocation0 [shape = 'u32[]', space=smem, size = 0x4, offset = 0x4, fixed_abs, tag = 'smem constant byte address 0x4 - core index']
  #allocation1 [shape = 'u32[144,128]{1,0:T(1,128)}', space=vmem, size = 0x12000, scoped, tag = 'internal scratch']
  %s0 = inlined_call_operand.vmem [shape: f32[2,32], index: 0, kind: input, shape index: {}]
  %s1 = inlined_call_operand.vmem [shape: bf16[32,32], index: 1, kind: input, shape index: {}]
  %s2 = inlined_call_operand.vmem [shape: f32[1,32], index: 2, kind: input, shape index: {}]
  %s3 = inlined_call_operand.vmem [shape: bf16[32,128], index: 3, kind: input, shape index: {}]
  %s4 = inlined_call_operand.vmem [shape: f32[1,128], index: 4, kind: input, shape index: {}]
  %s5 = inlined_call_operand.hbm [shape: f32[2,128], index: 5, kind: output, shape index: {}]
  %s6 = sld [smem:[#allocation0]]
  $region30: #{bert_forward.3} parent=0
    _
  %s8 = ssub.s32 1, %s6
  %s9 = scalar_select 0, %s8, %s6
  $region1: #{bert_forward.3} parent=0
    #allocation2 [shape = 'u8[1024]{0}', space=vmem, size = 0x400, scoped, tag = 'output window, operand 0, single buffered']
    #allocation3 [shape = 's32[1]{0}', space=sflag, size = 0x4, scoped, tag = 'scoped memory for bert_forward.3']
    %10 = vsyncpa [#allocation3], 0
    // Predicated region
    $region2: #{bert_forward.3} parent=1 // pred_check
      _
    $region3: #{bert_forward.3} parent=1 // pred_check_branch
      %12 = sbr.rel (0) target = $region5
    $region4: #{bert_forward.3} parent=1 // pred_region
      _
    $region5: #{bert_forward.3} parent=1 // pred_fallthru
      _
    // Predicated region
    $region6: #{bert_forward.3} parent=1 // pred_check
      _
    $region7: #{bert_forward.3} parent=1 // pred_check_branch
      %14 = sbr.rel (0) target = $region9
    $region8: #{bert_forward.3} parent=1 // pred_region
      _
    $region9: #{bert_forward.3} parent=1 // pred_fallthru
      _
    // Predicated region
    $region10: #{bert_forward.3} parent=1 // pred_check
      _
    $region11: #{bert_forward.3} parent=1 // pred_check_branch
      %16 = sbr.rel (0) target = $region13
    $region12: #{bert_forward.3} parent=1 // pred_region
      _
    $region13: #{bert_forward.3} parent=1 // pred_fallthru
      _
    // Predicated region
    $region14: #{bert_forward.3} parent=1 // pred_check
      _
    $region15: #{bert_forward.3} parent=1 // pred_check_branch
      %18 = sbr.rel (0) target = $region17
    $region16: #{bert_forward.3} parent=1 // pred_region
      _
    $region17: #{bert_forward.3} parent=1 // pred_fallthru
      _
    // Predicated region
    $region18: #{bert_forward.3} parent=1 // pred_check
      _
    $region19: #{bert_forward.3} parent=1 // pred_check_branch
      %20 = sbr.rel (0) target = $region21
    $region20: #{bert_forward.3} parent=1 // pred_region
      _
    $region21: #{bert_forward.3} parent=1 // pred_fallthru
      _
    %v22 = vld [vmem:[%s0] sm:$0x3]
    %v23 = vpack.c.bf16 %v22, %v22
    %v24 = vld [vmem:[%s1] sm:$0xf]
    %v25 = vld [vmem:[%s1 + $0x4] sm:$0xf]
    %v26 = vld [vmem:[%s1 + $0x8] sm:$0xf]
    %v27 = vld [vmem:[%s1 + $0xc] sm:$0xf]
    %v28 = vld [vmem:[%s2] sm:$0x1]
    %v30 = vlaneseq
    %v31 = vshrl.u32 %v30, 7
    %v32 = vsub.s32 0, %v31
    %v33 = vrot.slane %v28, %v32
    %v39 = vunpack.c.l.b16 %v24
    %v40 = vunpack.c.l.b16 %v25
    %v41 = vunpack.c.l.b16 %v26
    %v42 = vunpack.c.l.b16 %v27
    %v43 = vpack.c.b16 %v40, %v39
    %v44 = vpack.c.b16 %v42, %v41
    %vm47 = vcmask 261120
    %v49 = vsel %vm47, %v23, 0
    %51 = vmatprep.subr.bf16.mxu0 0
    %52 = vmatpush1.bf16.msra.mxu0 0
    %53 = vmatprep.subr.bf16.mxu0 0
    %54 = vmatpush1.bf16.msra.mxu0 0
    %55 = vmatprep.subr.bf16.mxu0 0
    %56 = vmatpush1.bf16.msra.mxu0 0
    %57 = vmatprep.subr.bf16.mxu0 0
    %58 = vmatpush1.bf16.msra.mxu0 0
    %59 = vmatprep.subr.bf16.mxu0 0
    %60 = vmatpush1.bf16.msra.mxu0 0
    %61 = vmatprep.subr.bf16.mxu0 0
    %62 = vmatpush1.bf16.msra.mxu0 0
    %63 = vmatprep.subr.bf16.mxu0 0
    %64 = vmatpush1.bf16.msra.mxu0 %v44
    %65 = vmatprep.subr.bf16.mxu0 0
    %66 = vmatpush1.bf16.msra.mxu0 %v43
    %67 = vmatprep.subr.bf16.mxu0 0
    %68 = vmatpush2.bf16.msra.mxu0 0
    %69 = vmatprep.subr.bf16.mxu0 0
    %70 = vmatpush2.bf16.msra.mxu0 0
    %71 = vmatprep.subr.bf16.mxu0 0
    %72 = vmatpush2.bf16.msra.mxu0 0
    %73 = vmatprep.subr.bf16.mxu0 0
    %74 = vmatpush2.bf16.msra.mxu0 0
    %75 = vmatprep.subr.bf16.mxu0 0
    %76 = vmatpush2.bf16.msra.mxu0 0
    %77 = vmatprep.subr.bf16.mxu0 0
    %78 = vmatpush2.bf16.msra.mxu0 0
    %79 = vmatprep.subr.bf16.mxu0 0
    %80 = vmatpush2.bf16.msra.mxu0 0
    %81 = vmatprep.subr.bf16.mxu0 0
    %82 = vmatpush2.bf16.msra.mxu0 0
    %83 = vmatprep.mubr.bf16.mxu0 0
    %84 = vmatmul.mubr.bf16.gmra.mxu0 %v49
    %v85 = vpop.f32.mrf.mxu0
    %v86 = vadd.f32 %v33, %v85
    %v87 = vpop.f32.mrf.mxu0
    %v88 = vpop.f32.mrf.mxu0
    %v89 = vpop.f32.mrf.mxu0
    %90 = vdwg.mxu0
    %v91 = vtanh.pop %v86
    %v92 = vpack.c.bf16 %v91, %v91
    %v93 = vld [vmem:[%s3] sm:$0xf]
    %v94 = vld [vmem:[%s3 + $0x4] sm:$0xf]
    %v95 = vld [vmem:[%s3 + $0x8] sm:$0xf]
    %v96 = vld [vmem:[%s3 + $0xc] sm:$0xf]
    %v97 = vld [vmem:[%s4] sm:$0x1]
    %v99 = vlaneseq
    %v100 = vshrl.u32 %v99, 7
    %v101 = vsub.s32 0, %v100
    %v102 = vrot.slane %v97, %v101
    %v108 = vunpack.c.l.b16 %v93
    %v109 = vunpack.c.l.b16 %v94
    %v110 = vunpack.c.l.b16 %v95
    %v111 = vunpack.c.l.b16 %v96
    %v112 = vpack.c.b16 %v109, %v108
    %v113 = vpack.c.b16 %v111, %v110
    %v117 = vsel %vm47, %v92, 0
    %119 = vmatprep.subr.bf16.mxu0 0
    %120 = vmatpush1.bf16.msra.mxu0 0
    %121 = vmatprep.subr.bf16.mxu0 0
    %122 = vmatpush1.bf16.msra.mxu0 0
    %123 = vmatprep.subr.bf16.mxu0 0
    %124 = vmatpush1.bf16.msra.mxu0 0
    %125 = vmatprep.subr.bf16.mxu0 0
    %126 = vmatpush1.bf16.msra.mxu0 0
    %127 = vmatprep.subr.bf16.mxu0 0
    %128 = vmatpush1.bf16.msra.mxu0 0
    %129 = vmatprep.subr.bf16.mxu0 0
    %130 = vmatpush1.bf16.msra.mxu0 0
    %131 = vmatprep.subr.bf16.mxu0 0
    %132 = vmatpush1.bf16.msra.mxu0 %v113
    %133 = vmatprep.subr.bf16.mxu0 0
    %134 = vmatpush1.bf16.msra.mxu0 %v112
    %135 = vmatprep.subr.bf16.mxu0 0
    %136 = vmatpush2.bf16.msra.mxu0 0
    %137 = vmatprep.subr.bf16.mxu0 0
    %138 = vmatpush2.bf16.msra.mxu0 0
    %139 = vmatprep.subr.bf16.mxu0 0
    %140 = vmatpush2.bf16.msra.mxu0 0
    %141 = vmatprep.subr.bf16.mxu0 0
    %142 = vmatpush2.bf16.msra.mxu0 0
    %143 = vmatprep.subr.bf16.mxu0 0
    %144 = vmatpush2.bf16.msra.mxu0 0
    %145 = vmatprep.subr.bf16.mxu0 0
    %146 = vmatpush2.bf16.msra.mxu0 0
    %147 = vmatprep.subr.bf16.mxu0 0
    %148 = vmatpush2.bf16.msra.mxu0 0
    %149 = vmatprep.subr.bf16.mxu0 0
    %150 = vmatpush2.bf16.msra.mxu0 0
    %151 = vmatprep.mubr.bf16.mxu0 0
    %152 = vmatmul.mubr.bf16.gmra.mxu0 %v117
    %v153 = vpop.f32.mrf.mxu0
    %v154 = vadd.f32 %v102, %v153
    %v155 = vpop.f32.mrf.mxu0
    %v156 = vpop.f32.mrf.mxu0
    %v157 = vpop.f32.mrf.mxu0
    %158 = vdwg.mxu0
    %159 = vst [vmem:[#allocation2] sm:$0x3] %v154
    // Predicated region
    $region22: #{bert_forward.3} parent=1 // pred_check
      _
    $region23: #{bert_forward.3} parent=1 // pred_check_branch
      %161 = sbr.rel (0) target = $region25
    $region24: #{bert_forward.3} parent=1 // pred_region
      %s163 = ssub.s32 32, 32
      %164 = vsyncadd [#allocation3], %s163
      %s166 = sshll.u32 [#allocation2], 4
      %s167 = int_to_ptr.vmem [resolvable:$true] %s166
      %169 = dma.vmem_to_hbm [thread:$0]  %s167, 32, %s5, [#allocation3]
    $region25: #{bert_forward.3} parent=1 // pred_fallthru
      _
    // Predicated region
    $region26: #{bert_forward.3} parent=1 // pred_check
      _
    $region27: #{bert_forward.3} parent=1 // pred_check_branch
      %171 = sbr.rel (0) target = $region29
    $region28: #{bert_forward.3} parent=1 // pred_region
      %172 = dma.done [#allocation3], 32
    $region29: #{bert_forward.3} parent=1 // pred_fallthru
      _
    %173 = vsyncpa [#allocation3], 1

// kernel: bert_forward.2
$region0: #{bert_forward.2}
  #allocation0 [shape = 'u32[]', space=smem, size = 0x4, offset = 0x4, fixed_abs, tag = 'smem constant byte address 0x4 - core index']
  #allocation1 [shape = 'u32[144,128]{1,0:T(1,128)}', space=vmem, size = 0x12000, scoped, tag = 'internal scratch']
  #allocation2 [shape = 'f32[16,32]{1,0:T(8,128)}', space=vmem, size = 0x2000, scoped, tag = 'scratch operand']
  %s0 = inlined_call_operand.vmem [shape: f32[16,32], index: 0, kind: input, shape index: {}]
  %s1 = inlined_call_operand.vmem [shape: f32[2,1,8], index: 1, kind: input, shape index: {}]
  %s2 = inlined_call_operand.vmem [shape: f32[1,32], index: 2, kind: input, shape index: {}]
  %s3 = inlined_call_operand.vmem [shape: f32[1,32], index: 3, kind: input, shape index: {}]
  %s4 = inlined_call_operand.vmem [shape: bf16[2,32,96], index: 4, kind: input, shape index: {}]
  %s5 = inlined_call_operand.vmem [shape: f32[2,1,96], index: 5, kind: input, shape index: {}]
  %s6 = inlined_call_operand.vmem [shape: bf16[2,32,32], index: 6, kind: input, shape index: {}]
  %s7 = inlined_call_operand.vmem [shape: f32[2,1,32], index: 7, kind: input, shape index: {}]
  %s8 = inlined_call_operand.vmem [shape: f32[2,1,32], index: 8, kind: input, shape index: {}]
  %s9 = inlined_call_operand.vmem [shape: f32[2,1,32], index: 9, kind: input, shape index: {}]
  %s10 = inlined_call_operand.vmem [shape: bf16[2,32,64], index: 10, kind: input, shape index: {}]
  %s11 = inlined_call_operand.vmem [shape: f32[2,1,64], index: 11, kind: input, shape index: {}]
  %s12 = inlined_call_operand.vmem [shape: bf16[2,64,32], index: 12, kind: input, shape index: {}]
  %s13 = inlined_call_operand.vmem [shape: f32[2,1,32], index: 13, kind: input, shape index: {}]
  %s14 = inlined_call_operand.vmem [shape: f32[2,1,32], index: 14, kind: input, shape index: {}]
  %s15 = inlined_call_operand.vmem [shape: f32[2,1,32], index: 15, kind: input, shape index: {}]
  %s16 = inlined_call_operand.vmem [shape: f32[16,32], index: 16, kind: output, shape index: {}]
  %s17 = sld [smem:[#allocation0]]
  $region105: #{bert_forward.2} parent=0
    _
  %s19 = ssub.s32 1, %s17
  %s20 = scalar_select 0, %s19, %s17
  loop: start=0, step=1, limit=4
  $region2: #{bert_forward.2} parent=0 // loop_pre_header
    _
  $region3: #{bert_forward.2} parent=0 // loop_header
    %s22 = sphi 0, %s26
    %p23 = scmp.ge.s32.totalorder %s22, 4
    %s30 = sphi 0, %s30
    %s32 = sphi 0, %s30
    %s33 = sphi 0, %s32
    %s47 = sphi 0, %s33
    %s51 = sphi 0, %s51
    %s53 = sphi 0, %s51
    %s54 = sphi 0, %s53
    %s68 = sphi 0, %s54
    %s72 = sphi 0, %s72
    %s74 = sphi 0, %s72
    %s75 = sphi 0, %s74
    %s89 = sphi 0, %s75
    %s93 = sphi 0, %s93
    %s95 = sphi 0, %s93
    %s96 = sphi 0, %s95
    %s110 = sphi 0, %s96
    %s116 = sphi 0, %s118
    %s119 = sphi 0, %s116
    %s120 = sphi 0, %s119
    %s136 = sphi 0, %s120
    %s142 = sphi 0, %s144
    %s145 = sphi 0, %s142
    %s146 = sphi 0, %s145
    %s162 = sphi 0, %s146
    %s168 = sphi 0, %s170
    %s171 = sphi 0, %s168
    %s172 = sphi 0, %s171
    %s188 = sphi 0, %s172
    %s194 = sphi 0, %s196
    %s197 = sphi 0, %s194
    %s198 = sphi 0, %s197
    %s214 = sphi 0, %s198
    %s220 = sphi 0, %s222
    %s223 = sphi 0, %s220
    %s224 = sphi 0, %s223
    %s240 = sphi 0, %s224
    %s246 = sphi 0, %s248
    %s249 = sphi 0, %s246
    %s250 = sphi 0, %s249
    %s266 = sphi 0, %s250
    %s272 = sphi 0, %s274
    %s275 = sphi 0, %s272
    %s276 = sphi 0, %s275
    %s292 = sphi 0, %s276
    %s298 = sphi 0, %s300
    %s301 = sphi 0, %s298
    %s302 = sphi 0, %s301
    %s318 = sphi 0, %s302
    %s324 = sphi 0, %s326
    %s327 = sphi 0, %s324
    %s328 = sphi 0, %s327
    %s344 = sphi 0, %s328
    %s350 = sphi 0, %s352
    %s353 = sphi 0, %s350
    %s354 = sphi 0, %s353
    %s370 = sphi 0, %s354
    %s376 = sphi 0, %s378
    %s379 = sphi 0, %s376
    %s380 = sphi 0, %s379
    %s396 = sphi 0, %s380
    %s402 = sphi 0, %s404
    %s405 = sphi 0, %s402
    %s406 = sphi 0, %s405
    %s422 = sphi 0, %s406
    %s426 = sphi 0, %s426
    %s428 = sphi 0, %s426
    %s429 = sphi 0, %s428
    %s443 = sphi 0, %s429
  $region4: #{bert_forward.2} parent=0 // loop_header_branch
    %25 = sbr.rel (%p23) target = $region8
  $region5: #{bert_forward.2} parent=0 // loop_body
    %s27 = ssub.s32 %s22, 1
    %s28 = ssub.s32 %s22, 2
    %s29 = sadd.s32 %s22, 1
    %s31 = sadd.s32 %s30, 1
    %p34 = scmp.eq.s32.totalorder %s22, 1
    %p35 = scmp.ne.s32.totalorder %s30, %s32
    %p36 = scmp.eq.s32.totalorder %s22, 0
    %p37 = por %p35, %p36
    %p38 = scmp.ne.s32.totalorder %s30, %s32
    %p39 = scmp.eq.s32.totalorder %s27, 1
    %p40 = por %p38, %p39
    %p41 = scmp.ne.s32.totalorder %s32, %s33
    %p42 = scmp.eq.s32.totalorder %s27, 0
    %p43 = por %p41, %p42
    %p44 = scmp.ne.s32.totalorder %s32, %s33
    %p45 = scmp.eq.s32.totalorder %s28, 1
    %p46 = por %p44, %p45
    %p48 = scmp.ne.s32.totalorder %s33, %s47
    %p49 = scmp.eq.s32.totalorder %s28, 0
    %p50 = por %p48, %p49
    %s52 = sadd.s32 %s51, 1
    %p55 = scmp.eq.s32.totalorder %s22, 1
    %p56 = scmp.ne.s32.totalorder %s51, %s53
    %p57 = scmp.eq.s32.totalorder %s22, 0
    %p58 = por %p56, %p57
    %p59 = scmp.ne.s32.totalorder %s51, %s53
    %p60 = scmp.eq.s32.totalorder %s27, 1
    %p61 = por %p59, %p60
    %p62 = scmp.ne.s32.totalorder %s53, %s54
    %p63 = scmp.eq.s32.totalorder %s27, 0
    %p64 = por %p62, %p63
    %p65 = scmp.ne.s32.totalorder %s53, %s54
    %p66 = scmp.eq.s32.totalorder %s28, 1
    %p67 = por %p65, %p66
    %p69 = scmp.ne.s32.totalorder %s54, %s68
    %p70 = scmp.eq.s32.totalorder %s28, 0
    %p71 = por %p69, %p70
    %s73 = sadd.s32 %s72, 1
    %p76 = scmp.eq.s32.totalorder %s22, 1
    %p77 = scmp.ne.s32.totalorder %s72, %s74
    %p78 = scmp.eq.s32.totalorder %s22, 0
    %p79 = por %p77, %p78
    %p80 = scmp.ne.s32.totalorder %s72, %s74
    %p81 = scmp.eq.s32.totalorder %s27, 1
    %p82 = por %p80, %p81
    %p83 = scmp.ne.s32.totalorder %s74, %s75
    %p84 = scmp.eq.s32.totalorder %s27, 0
    %p85 = por %p83, %p84
    %p86 = scmp.ne.s32.totalorder %s74, %s75
    %p87 = scmp.eq.s32.totalorder %s28, 1
    %p88 = por %p86, %p87
    %p90 = scmp.ne.s32.totalorder %s75, %s89
    %p91 = scmp.eq.s32.totalorder %s28, 0
    %p92 = por %p90, %p91
    %s94 = sadd.s32 %s93, 1
    %p97 = scmp.eq.s32.totalorder %s22, 1
    %p98 = scmp.ne.s32.totalorder %s93, %s95
    %p99 = scmp.eq.s32.totalorder %s22, 0
    %p100 = por %p98, %p99
    %p101 = scmp.ne.s32.totalorder %s93, %s95
    %p102 = scmp.eq.s32.totalorder %s27, 1
    %p103 = por %p101, %p102
    %p104 = scmp.ne.s32.totalorder %s95, %s96
    %p105 = scmp.eq.s32.totalorder %s27, 0
    %p106 = por %p104, %p105
    %p107 = scmp.ne.s32.totalorder %s95, %s96
    %p108 = scmp.eq.s32.totalorder %s28, 1
    %p109 = por %p107, %p108
    %p111 = scmp.ne.s32.totalorder %s96, %s110
    %p112 = scmp.eq.s32.totalorder %s28, 0
    %p113 = por %p111, %p112
    %s114 = ssub.s32 %s22, %s29
    %p115 = scmp.eq.s32.totalorder %s114, 0
    %s117 = sadd.s32 %s116, 1
    %s118 = scalar_select %p115, %s116, %s117
    %p121 = pneg %p115
    %p122 = scmp.eq.s32.totalorder %s22, 1
    %p123 = por %p121, %p122
    %p124 = scmp.ne.s32.totalorder %s116, %s119
    %p125 = scmp.eq.s32.totalorder %s22, 0
    %p126 = por %p124, %p125
    %p127 = scmp.ne.s32.totalorder %s116, %s119
    %p128 = scmp.eq.s32.totalorder %s27, 1
    %p129 = por %p127, %p128
    %p130 = scmp.ne.s32.totalorder %s119, %s120
    %p131 = scmp.eq.s32.totalorder %s27, 0
    %p132 = por %p130, %p131
    %p133 = scmp.ne.s32.totalorder %s119, %s120
    %p134 = scmp.eq.s32.totalorder %s28, 1
    %p135 = por %p133, %p134
    %p137 = scmp.ne.s32.totalorder %s120, %s136
    %p138 = scmp.eq.s32.totalorder %s28, 0
    %p139 = por %p137, %p138
    %s140 = ssub.s32 %s22, %s29
    %p141 = scmp.eq.s32.totalorder %s140, 0
    %s143 = sadd.s32 %s142, 1
    %s144 = scalar_select %p141, %s142, %s143
    %p147 = pneg %p141
    %p148 = scmp.eq.s32.totalorder %s22, 1
    %p149 = por %p147, %p148
    %p150 = scmp.ne.s32.totalorder %s142, %s145
    %p151 = scmp.eq.s32.totalorder %s22, 0
    %p152 = por %p150, %p151
    %p153 = scmp.ne.s32.totalorder %s142, %s145
    %p154 = scmp.eq.s32.totalorder %s27, 1
    %p155 = por %p153, %p154
    %p156 = scmp.ne.s32.totalorder %s145, %s146
    %p157 = scmp.eq.s32.totalorder %s27, 0
    %p158 = por %p156, %p157
    %p159 = scmp.ne.s32.totalorder %s145, %s146
    %p160 = scmp.eq.s32.totalorder %s28, 1
    %p161 = por %p159, %p160
    %p163 = scmp.ne.s32.totalorder %s146, %s162
    %p164 = scmp.eq.s32.totalorder %s28, 0
    %p165 = por %p163, %p164
    %s166 = ssub.s32 %s22, %s29
    %p167 = scmp.eq.s32.totalorder %s166, 0
    %s169 = sadd.s32 %s168, 1
    %s170 = scalar_select %p167, %s168, %s169
    %p173 = pneg %p167
    %p174 = scmp.eq.s32.totalorder %s22, 1
    %p175 = por %p173, %p174
    %p176 = scmp.ne.s32.totalorder %s168, %s171
    %p177 = scmp.eq.s32.totalorder %s22, 0
    %p178 = por %p176, %p177
    %p179 = scmp.ne.s32.totalorder %s168, %s171
    %p180 = scmp.eq.s32.totalorder %s27, 1
    %p181 = por %p179, %p180
    %p182 = scmp.ne.s32.totalorder %s171, %s172
    %p183 = scmp.eq.s32.totalorder %s27, 0
    %p184 = por %p182, %p183
    %p185 = scmp.ne.s32.totalorder %s171, %s172
    %p186 = scmp.eq.s32.totalorder %s28, 1
    %p187 = por %p185, %p186
    %p189 = scmp.ne.s32.totalorder %s172, %s188
    %p190 = scmp.eq.s32.totalorder %s28, 0
    %p191 = por %p189, %p190
    %s192 = ssub.s32 %s22, %s29
    %p193 = scmp.eq.s32.totalorder %s192, 0
    %s195 = sadd.s32 %s194, 1
    %s196 = scalar_select %p193, %s194, %s195
    %p199 = pneg %p193
    %p200 = scmp.eq.s32.totalorder %s22, 1
    %p201 = por %p199, %p200
    %p202 = scmp.ne.s32.totalorder %s194, %s197
    %p203 = scmp.eq.s32.totalorder %s22, 0
    %p204 = por %p202, %p203
    %p205 = scmp.ne.s32.totalorder %s194, %s197
    %p206 = scmp.eq.s32.totalorder %s27, 1
    %p207 = por %p205, %p206
    %p208 = scmp.ne.s32.totalorder %s197, %s198
    %p209 = scmp.eq.s32.totalorder %s27, 0
    %p210 = por %p208, %p209
    %p211 = scmp.ne.s32.totalorder %s197, %s198
    %p212 = scmp.eq.s32.totalorder %s28, 1
    %p213 = por %p211, %p212
    %p215 = scmp.ne.s32.totalorder %s198, %s214
    %p216 = scmp.eq.s32.totalorder %s28, 0
    %p217 = por %p215, %p216
    %s218 = ssub.s32 %s22, %s29
    %p219 = scmp.eq.s32.totalorder %s218, 0
    %s221 = sadd.s32 %s220, 1
    %s222 = scalar_select %p219, %s220, %s221
    %p225 = pneg %p219
    %p226 = scmp.eq.s32.totalorder %s22, 1
    %p227 = por %p225, %p226
    %p228 = scmp.ne.s32.totalorder %s220, %s223
    %p229 = scmp.eq.s32.totalorder %s22, 0
    %p230 = por %p228, %p229
    %p231 = scmp.ne.s32.totalorder %s220, %s223
    %p232 = scmp.eq.s32.totalorder %s27, 1
    %p233 = por %p231, %p232
    %p234 = scmp.ne.s32.totalorder %s223, %s224
    %p235 = scmp.eq.s32.totalorder %s27, 0
    %p236 = por %p234, %p235
    %p237 = scmp.ne.s32.totalorder %s223, %s224
    %p238 = scmp.eq.s32.totalorder %s28, 1
    %p239 = por %p237, %p238
    %p241 = scmp.ne.s32.totalorder %s224, %s240
    %p242 = scmp.eq.s32.totalorder %s28, 0
    %p243 = por %p241, %p242
    %s244 = ssub.s32 %s22, %s29
    %p245 = scmp.eq.s32.totalorder %s244, 0
    %s247 = sadd.s32 %s246, 1
    %s248 = scalar_select %p245, %s246, %s247
    %p251 = pneg %p245
    %p252 = scmp.eq.s32.totalorder %s22, 1
    %p253 = por %p251, %p252
    %p254 = scmp.ne.s32.totalorder %s246, %s249
    %p255 = scmp.eq.s32.totalorder %s22, 0
    %p256 = por %p254, %p255
    %p257 = scmp.ne.s32.totalorder %s246, %s249
    %p258 = scmp.eq.s32.totalorder %s27, 1
    %p259 = por %p257, %p258
    %p260 = scmp.ne.s32.totalorder %s249, %s250
    %p261 = scmp.eq.s32.totalorder %s27, 0
    %p262 = por %p260, %p261
    %p263 = scmp.ne.s32.totalorder %s249, %s250
    %p264 = scmp.eq.s32.totalorder %s28, 1
    %p265 = por %p263, %p264
    %p267 = scmp.ne.s32.totalorder %s250, %s266
    %p268 = scmp.eq.s32.totalorder %s28, 0
    %p269 = por %p267, %p268
    %s270 = ssub.s32 %s22, %s29
    %p271 = scmp.eq.s32.totalorder %s270, 0
    %s273 = sadd.s32 %s272, 1
    %s274 = scalar_select %p271, %s272, %s273
    %p277 = pneg %p271
    %p278 = scmp.eq.s32.totalorder %s22, 1
    %p279 = por %p277, %p278
    %p280 = scmp.ne.s32.totalorder %s272, %s275
    %p281 = scmp.eq.s32.totalorder %s22, 0
    %p282 = por %p280, %p281
    %p283 = scmp.ne.s32.totalorder %s272, %s275
    %p284 = scmp.eq.s32.totalorder %s27, 1
    %p285 = por %p283, %p284
    %p286 = scmp.ne.s32.totalorder %s275, %s276
    %p287 = scmp.eq.s32.totalorder %s27, 0
    %p288 = por %p286, %p287
    %p289 = scmp.ne.s32.totalorder %s275, %s276
    %p290 = scmp.eq.s32.totalorder %s28, 1
    %p291 = por %p289, %p290
    %p293 = scmp.ne.s32.totalorder %s276, %s292
    %p294 = scmp.eq.s32.totalorder %s28, 0
    %p295 = por %p293, %p294
    %s296 = ssub.s32 %s22, %s29
    %p297 = scmp.eq.s32.totalorder %s296, 0
    %s299 = sadd.s32 %s298, 1
    %s300 = scalar_select %p297, %s298, %s299
    %p303 = pneg %p297
    %p304 = scmp.eq.s32.totalorder %s22, 1
    %p305 = por %p303, %p304
    %p306 = scmp.ne.s32.totalorder %s298, %s301
    %p307 = scmp.eq.s32.totalorder %s22, 0
    %p308 = por %p306, %p307
    %p309 = scmp.ne.s32.totalorder %s298, %s301
    %p310 = scmp.eq.s32.totalorder %s27, 1
    %p311 = por %p309, %p310
    %p312 = scmp.ne.s32.totalorder %s301, %s302
    %p313 = scmp.eq.s32.totalorder %s27, 0
    %p314 = por %p312, %p313
    %p315 = scmp.ne.s32.totalorder %s301, %s302
    %p316 = scmp.eq.s32.totalorder %s28, 1
    %p317 = por %p315, %p316
    %p319 = scmp.ne.s32.totalorder %s302, %s318
    %p320 = scmp.eq.s32.totalorder %s28, 0
    %p321 = por %p319, %p320
    %s322 = ssub.s32 %s22, %s29
    %p323 = scmp.eq.s32.totalorder %s322, 0
    %s325 = sadd.s32 %s324, 1
    %s326 = scalar_select %p323, %s324, %s325
    %p329 = pneg %p323
    %p330 = scmp.eq.s32.totalorder %s22, 1
    %p331 = por %p329, %p330
    %p332 = scmp.ne.s32.totalorder %s324, %s327
    %p333 = scmp.eq.s32.totalorder %s22, 0
    %p334 = por %p332, %p333
    %p335 = scmp.ne.s32.totalorder %s324, %s327
    %p336 = scmp.eq.s32.totalorder %s27, 1
    %p337 = por %p335, %p336
    %p338 = scmp.ne.s32.totalorder %s327, %s328
    %p339 = scmp.eq.s32.totalorder %s27, 0
    %p340 = por %p338, %p339
    %p341 = scmp.ne.s32.totalorder %s327, %s328
    %p342 = scmp.eq.s32.totalorder %s28, 1
    %p343 = por %p341, %p342
    %p345 = scmp.ne.s32.totalorder %s328, %s344
    %p346 = scmp.eq.s32.totalorder %s28, 0
    %p347 = por %p345, %p346
    %s348 = ssub.s32 %s22, %s29
    %p349 = scmp.eq.s32.totalorder %s348, 0
    %s351 = sadd.s32 %s350, 1
    %s352 = scalar_select %p349, %s350, %s351
    %p355 = pneg %p349
    %p356 = scmp.eq.s32.totalorder %s22, 1
    %p357 = por %p355, %p356
    %p358 = scmp.ne.s32.totalorder %s350, %s353
    %p359 = scmp.eq.s32.totalorder %s22, 0
    %p360 = por %p358, %p359
    %p361 = scmp.ne.s32.totalorder %s350, %s353
    %p362 = scmp.eq.s32.totalorder %s27, 1
    %p363 = por %p361, %p362
    %p364 = scmp.ne.s32.totalorder %s353, %s354
    %p365 = scmp.eq.s32.totalorder %s27, 0
    %p366 = por %p364, %p365
    %p367 = scmp.ne.s32.totalorder %s353, %s354
    %p368 = scmp.eq.s32.totalorder %s28, 1
    %p369 = por %p367, %p368
    %p371 = scmp.ne.s32.totalorder %s354, %s370
    %p372 = scmp.eq.s32.totalorder %s28, 0
    %p373 = por %p371, %p372
    %s374 = ssub.s32 %s22, %s29
    %p375 = scmp.eq.s32.totalorder %s374, 0
    %s377 = sadd.s32 %s376, 1
    %s378 = scalar_select %p375, %s376, %s377
    %p381 = pneg %p375
    %p382 = scmp.eq.s32.totalorder %s22, 1
    %p383 = por %p381, %p382
    %p384 = scmp.ne.s32.totalorder %s376, %s379
    %p385 = scmp.eq.s32.totalorder %s22, 0
    %p386 = por %p384, %p385
    %p387 = scmp.ne.s32.totalorder %s376, %s379
    %p388 = scmp.eq.s32.totalorder %s27, 1
    %p389 = por %p387, %p388
    %p390 = scmp.ne.s32.totalorder %s379, %s380
    %p391 = scmp.eq.s32.totalorder %s27, 0
    %p392 = por %p390, %p391
    %p393 = scmp.ne.s32.totalorder %s379, %s380
    %p394 = scmp.eq.s32.totalorder %s28, 1
    %p395 = por %p393, %p394
    %p397 = scmp.ne.s32.totalorder %s380, %s396
    %p398 = scmp.eq.s32.totalorder %s28, 0
    %p399 = por %p397, %p398
    %s400 = ssub.s32 %s22, %s29
    %p401 = scmp.eq.s32.totalorder %s400, 0
    %s403 = sadd.s32 %s402, 1
    %s404 = scalar_select %p401, %s402, %s403
    %p407 = pneg %p401
    %p408 = scmp.eq.s32.totalorder %s22, 1
    %p409 = por %p407, %p408
    %p410 = scmp.ne.s32.totalorder %s402, %s405
    %p411 = scmp.eq.s32.totalorder %s22, 0
    %p412 = por %p410, %p411
    %p413 = scmp.ne.s32.totalorder %s402, %s405
    %p414 = scmp.eq.s32.totalorder %s27, 1
    %p415 = por %p413, %p414
    %p416 = scmp.ne.s32.totalorder %s405, %s406
    %p417 = scmp.eq.s32.totalorder %s27, 0
    %p418 = por %p416, %p417
    %p419 = scmp.ne.s32.totalorder %s405, %s406
    %p420 = scmp.eq.s32.totalorder %s28, 1
    %p421 = por %p419, %p420
    %p423 = scmp.ne.s32.totalorder %s406, %s422
    %p424 = scmp.eq.s32.totalorder %s28, 0
    %p425 = por %p423, %p424
    %s427 = sadd.s32 %s426, 1
    %p430 = scmp.eq.s32.totalorder %s22, 1
    %p431 = scmp.ne.s32.totalorder %s426, %s428
    %p432 = scmp.eq.s32.totalorder %s22, 0
    %p433 = por %p431, %p432
    %p434 = scmp.ne.s32.totalorder %s426, %s428
    %p435 = scmp.eq.s32.totalorder %s27, 1
    %p436 = por %p434, %p435
    %p437 = scmp.ne.s32.totalorder %s428, %s429
    %p438 = scmp.eq.s32.totalorder %s27, 0
    %p439 = por %p437, %p438
    %p440 = scmp.ne.s32.totalorder %s428, %s429
    %p441 = scmp.eq.s32.totalorder %s28, 1
    %p442 = por %p440, %p441
    %p444 = scmp.ne.s32.totalorder %s429, %s443
    %p445 = scmp.eq.s32.totalorder %s28, 0
    %p446 = por %p444, %p445
    %p447 = scmp.le.s32.totalorder 1, %s22
    %p448 = scmp.lt.s32.totalorder %s22, 3
    %p449 = pnand %p447, %p448
    %p450 = pneg %p449
    // Predicated region
    $region9: #{bert_forward.2} parent=5 // pred_check
      _
    $region10: #{bert_forward.2} parent=5 // pred_check_branch
      %452 = sbr.rel (%p449) target = $region12
    $region11: #{bert_forward.2} parent=5 // pred_region
      %s453 = ssub.s32 %s22, 1
      // Predicated region
      $region13: #{bert_forward.2} parent=11 // pred_check
        %p454 = pneg %p43
      $region14: #{bert_forward.2} parent=11 // pred_check_branch
        %456 = sbr.rel (%p454) target = $region16
      $region15: #{bert_forward.2} parent=11 // pred_region
        _
      $region16: #{bert_forward.2} parent=11 // pred_fallthru
        _
      // Predicated region
      $region17: #{bert_forward.2} parent=11 // pred_check
        %p457 = pneg %p64
      $region18: #{bert_forward.2} parent=11 // pred_check_branch
        %459 = sbr.rel (%p457) target = $region20
      $region19: #{bert_forward.2} parent=11 // pred_region
        _
      $region20: #{bert_forward.2} parent=11 // pred_fallthru
        _
      // Predicated region
      $region21: #{bert_forward.2} parent=11 // pred_check
        %p460 = pneg %p85
      $region22: #{bert_forward.2} parent=11 // pred_check_branch
        %462 = sbr.rel (%p460) target = $region24
      $region23: #{bert_forward.2} parent=11 // pred_region
        _
      $region24: #{bert_forward.2} parent=11 // pred_fallthru
        _
      // Predicated region
      $region25: #{bert_forward.2} parent=11 // pred_check
        %p463 = pneg %p106
      $region26: #{bert_forward.2} parent=11 // pred_check_branch
        %465 = sbr.rel (%p463) target = $region28
      $region27: #{bert_forward.2} parent=11 // pred_region
        _
      $region28: #{bert_forward.2} parent=11 // pred_fallthru
        _
    $region12: #{bert_forward.2} parent=5 // pred_fallthru
      _
    %p466 = scmp.lt.s32.totalorder %s22, 2
    // Predicated region
    $region29: #{bert_forward.2} parent=5 // pred_check
      %p467 = pneg %p466
    $region30: #{bert_forward.2} parent=5 // pred_check_branch
      %469 = sbr.rel (%p467) target = $region32
    $region31: #{bert_forward.2} parent=5 // pred_region
      // Predicated region
      $region33: #{bert_forward.2} parent=31 // pred_check
        %p470 = pneg %p126
      $region34: #{bert_forward.2} parent=31 // pred_check_branch
        %472 = sbr.rel (%p470) target = $region36
      $region35: #{bert_forward.2} parent=31 // pred_region
        %p473 = scmp.lt.s32.totalorder %s22, 1
        %s474 = scalar_select %p473, %s22, 1
        %s475 = smul.addr %s474, 4
        %s476 = smul.addr %s475, 4
        %s477 = scalar_lea.vmem %s4, %s476
      $region36: #{bert_forward.2} parent=31 // pred_fallthru
        _
      // Predicated region
      $region37: #{bert_forward.2} parent=31 // pred_check
        %p478 = pneg %p152
      $region38: #{bert_forward.2} parent=31 // pred_check_branch
        %480 = sbr.rel (%p478) target = $region40
      $region39: #{bert_forward.2} parent=31 // pred_region
        %p481 = scmp.lt.s32.totalorder %s22, 1
        %s482 = scalar_select %p481, %s22, 1
        %s483 = scalar_lea.vmem %s5, %s482
      $region40: #{bert_forward.2} parent=31 // pred_fallthru
        _
      // Predicated region
      $region41: #{bert_forward.2} parent=31 // pred_check
        %p484 = pneg %p178
      $region42: #{bert_forward.2} parent=31 // pred_check_branch
        %486 = sbr.rel (%p484) target = $region44
      $region43: #{bert_forward.2} parent=31 // pred_region
        %p487 = scmp.lt.s32.totalorder %s22, 1
        %s488 = scalar_select %p487, %s22, 1
        %s489 = smul.addr %s488, 4
        %s490 = smul.addr %s489, 4
        %s491 = scalar_lea.vmem %s6, %s490
      $region44: #{bert_forward.2} parent=31 // pred_fallthru
        _
      // Predicated region
      $region45: #{bert_forward.2} parent=31 // pred_check
        %p492 = pneg %p204
      $region46: #{bert_forward.2} parent=31 // pred_check_branch
        %494 = sbr.rel (%p492) target = $region48
      $region47: #{bert_forward.2} parent=31 // pred_region
        %p495 = scmp.lt.s32.totalorder %s22, 1
        %s496 = scalar_select %p495, %s22, 1
        %s497 = scalar_lea.vmem %s7, %s496
      $region48: #{bert_forward.2} parent=31 // pred_fallthru
        _
      // Predicated region
      $region49: #{bert_forward.2} parent=31 // pred_check
        %p498 = pneg %p230
      $region50: #{bert_forward.2} parent=31 // pred_check_branch
        %500 = sbr.rel (%p498) target = $region52
      $region51: #{bert_forward.2} parent=31 // pred_region
        %p501 = scmp.lt.s32.totalorder %s22, 1
        %s502 = scalar_select %p501, %s22, 1
        %s503 = scalar_lea.vmem %s8, %s502
      $region52: #{bert_forward.2} parent=31 // pred_fallthru
        _
      // Predicated region
      $region53: #{bert_forward.2} parent=31 // pred_check
        %p504 = pneg %p256
      $region54: #{bert_forward.2} parent=31 // pred_check_branch
        %506 = sbr.rel (%p504) target = $region56
      $region55: #{bert_forward.2} parent=31 // pred_region
        %p507 = scmp.lt.s32.totalorder %s22, 1
        %s508 = scalar_select %p507, %s22, 1
        %s509 = scalar_lea.vmem %s9, %s508
      $region56: #{bert_forward.2} parent=31 // pred_fallthru
        _
      // Predicated region
      $region57: #{bert_forward.2} parent=31 // pred_check
        %p510 = pneg %p282
      $region58: #{bert_forward.2} parent=31 // pred_check_branch
        %512 = sbr.rel (%p510) target = $region60
      $region59: #{bert_forward.2} parent=31 // pred_region
        %p513 = scmp.lt.s32.totalorder %s22, 1
        %s514 = scalar_select %p513, %s22, 1
        %s515 = smul.addr %s514, 4
        %s516 = smul.addr %s515, 4
        %s517 = scalar_lea.vmem %s10, %s516
      $region60: #{bert_forward.2} parent=31 // pred_fallthru
        _
      // Predicated region
      $region61: #{bert_forward.2} parent=31 // pred_check
        %p518 = pneg %p308
      $region62: #{bert_forward.2} parent=31 // pred_check_branch
        %520 = sbr.rel (%p518) target = $region64
      $region63: #{bert_forward.2} parent=31 // pred_region
        %p521 = scmp.lt.s32.totalorder %s22, 1
        %s522 = scalar_select %p521, %s22, 1
        %s523 = scalar_lea.vmem %s11, %s522
      $region64: #{bert_forward.2} parent=31 // pred_fallthru
        _
      // Predicated region
      $region65: #{bert_forward.2} parent=31 // pred_check
        %p524 = pneg %p334
      $region66: #{bert_forward.2} parent=31 // pred_check_branch
        %526 = sbr.rel (%p524) target = $region68
      $region67: #{bert_forward.2} parent=31 // pred_region
        %p527 = scmp.lt.s32.totalorder %s22, 1
        %s528 = scalar_select %p527, %s22, 1
        %s529 = smul.addr %s528, 8
        %s530 = smul.addr %s529, 4
        %s531 = scalar_lea.vmem %s12, %s530
      $region68: #{bert_forward.2} parent=31 // pred_fallthru
        _
      // Predicated region
      $region69: #{bert_forward.2} parent=31 // pred_check
        %p532 = pneg %p360
      $region70: #{bert_forward.2} parent=31 // pred_check_branch
        %534 = sbr.rel (%p532) target = $region72
      $region71: #{bert_forward.2} parent=31 // pred_region
        %p535 = scmp.lt.s32.totalorder %s22, 1
        %s536 = scalar_select %p535, %s22, 1
        %s537 = scalar_lea.vmem %s13, %s536
      $region72: #{bert_forward.2} parent=31 // pred_fallthru
        _
      // Predicated region
      $region73: #{bert_forward.2} parent=31 // pred_check
        %p538 = pneg %p386
      $region74: #{bert_forward.2} parent=31 // pred_check_branch
        %540 = sbr.rel (%p538) target = $region76
      $region75: #{bert_forward.2} parent=31 // pred_region
        %p541 = scmp.lt.s32.totalorder %s22, 1
        %s542 = scalar_select %p541, %s22, 1
        %s543 = scalar_lea.vmem %s14, %s542
      $region76: #{bert_forward.2} parent=31 // pred_fallthru
        _
      // Predicated region
      $region77: #{bert_forward.2} parent=31 // pred_check
        %p544 = pneg %p412
      $region78: #{bert_forward.2} parent=31 // pred_check_branch
        %546 = sbr.rel (%p544) target = $region80
      $region79: #{bert_forward.2} parent=31 // pred_region
        %p547 = scmp.lt.s32.totalorder %s22, 1
        %s548 = scalar_select %p547, %s22, 1
        %s549 = scalar_lea.vmem %s15, %s548
      $region80: #{bert_forward.2} parent=31 // pred_fallthru
        _
    $region32: #{bert_forward.2} parent=5 // pred_fallthru
      _
    %p550 = scmp.le.s32.totalorder 1, %s22
    %p551 = scmp.lt.s32.totalorder %s22, 3
    %p552 = pnand %p550, %p551
    %p553 = pneg %p552
    // Predicated region
    $region81: #{bert_forward.2} parent=5 // pred_check
      _
    $region82: #{bert_forward.2} parent=5 // pred_check_branch
      %555 = sbr.rel (%p552) target = $region84
    $region83: #{bert_forward.2} parent=5 // pred_region
      %s556 = ssub.s32 %s22, 1
      %p557 = pneg %p43
      %p558 = pneg %p40
      %p559 = pneg %p64
      %p560 = pneg %p61
      %p561 = pneg %p85
      %p562 = pneg %p82
      %p563 = pneg %p106
      %p564 = pneg %p103
      %p565 = scmp.lt.s32.totalorder %s27, 1
      %s566 = scalar_select %p565, %s27, 1
      %s567 = smul.addr %s566, 4
      %s568 = smul.addr %s567, 4
      %s569 = scalar_lea.vmem %s4, %s568
      %p570 = pneg %p132
      %p571 = pneg %p129
      %p572 = scmp.lt.s32.totalorder %s27, 1
      %s573 = scalar_select %p572, %s27, 1
      %s574 = scalar_lea.vmem %s5, %s573
      %p575 = pneg %p158
      %p576 = pneg %p155
      %p577 = scmp.lt.s32.totalorder %s27, 1
      %s578 = scalar_select %p577, %s27, 1
      %s579 = smul.addr %s578, 4
      %s580 = smul.addr %s579, 4
      %s581 = scalar_lea.vmem %s6, %s580
      %p582 = pneg %p184
      %p583 = pneg %p181
      %p584 = scmp.lt.s32.totalorder %s27, 1
      %s585 = scalar_select %p584, %s27, 1
      %s586 = scalar_lea.vmem %s7, %s585
      %p587 = pneg %p210
      %p588 = pneg %p207
      %p589 = scmp.lt.s32.totalorder %s27, 1
      %s590 = scalar_select %p589, %s27, 1
      %s591 = scalar_lea.vmem %s8, %s590
      %p592 = pneg %p236
      %p593 = pneg %p233
      %p594 = scmp.lt.s32.totalorder %s27, 1
      %s595 = scalar_select %p594, %s27, 1
      %s596 = scalar_lea.vmem %s9, %s595
      %p597 = pneg %p262
      %p598 = pneg %p259
      %p599 = scmp.lt.s32.totalorder %s27, 1
      %s600 = scalar_select %p599, %s27, 1
      %s601 = smul.addr %s600, 4
      %s602 = smul.addr %s601, 4
      %s603 = scalar_lea.vmem %s10, %s602
      %p604 = pneg %p288
      %p605 = pneg %p285
      %p606 = scmp.lt.s32.totalorder %s27, 1
      %s607 = scalar_select %p606, %s27, 1
      %s608 = scalar_lea.vmem %s11, %s607
      %p609 = pneg %p314
      %p610 = pneg %p311
      %p611 = scmp.lt.s32.totalorder %s27, 1
      %s612 = scalar_select %p611, %s27, 1
      %s613 = smul.addr %s612, 8
      %s614 = smul.addr %s613, 4
      %s615 = scalar_lea.vmem %s12, %s614
      %p616 = pneg %p340
      %p617 = pneg %p337
      %p618 = scmp.lt.s32.totalorder %s27, 1
      %s619 = scalar_select %p618, %s27, 1
      %s620 = scalar_lea.vmem %s13, %s619
      %p621 = pneg %p366
      %p622 = pneg %p363
      %p623 = scmp.lt.s32.totalorder %s27, 1
      %s624 = scalar_select %p623, %s27, 1
      %s625 = scalar_lea.vmem %s14, %s624
      %p626 = pneg %p392
      %p627 = pneg %p389
      %p628 = scmp.lt.s32.totalorder %s27, 1
      %s629 = scalar_select %p628, %s27, 1
      %s630 = scalar_lea.vmem %s15, %s629
      %p631 = pneg %p418
      %p632 = pneg %p415
      %p633 = pneg %p439
      %p634 = pneg %p436
      %p635 = scmp.lt.s32.totalorder %s27, 1
      %s636 = scalar_select %p635, %s27, 1
      %s637 = smul.addr %s636, 4
      %s638 = smul.addr %s637, 4
      %s639 = scalar_lea.vmem %s4, %s638
      %p640 = scmp.lt.s32.totalorder %s27, 1
      %s641 = scalar_select %p640, %s27, 1
      %s642 = scalar_lea.vmem %s5, %s641
      %p643 = scmp.lt.s32.totalorder %s27, 1
      %s644 = scalar_select %p643, %s27, 1
      %s645 = smul.addr %s644, 4
      %s646 = smul.addr %s645, 4
      %s647 = scalar_lea.vmem %s6, %s646
      %p648 = scmp.lt.s32.totalorder %s27, 1
      %s649 = scalar_select %p648, %s27, 1
      %s650 = scalar_lea.vmem %s7, %s649
      %p651 = scmp.lt.s32.totalorder %s27, 1
      %s652 = scalar_select %p651, %s27, 1
      %s653 = scalar_lea.vmem %s8, %s652
      %p654 = scmp.lt.s32.totalorder %s27, 1
      %s655 = scalar_select %p654, %s27, 1
      %s656 = scalar_lea.vmem %s9, %s655
      %p657 = scmp.lt.s32.totalorder %s27, 1
      %s658 = scalar_select %p657, %s27, 1
      %s659 = smul.addr %s658, 4
      %s660 = smul.addr %s659, 4
      %s661 = scalar_lea.vmem %s10, %s660
      %p662 = scmp.lt.s32.totalorder %s27, 1
      %s663 = scalar_select %p662, %s27, 1
      %s664 = scalar_lea.vmem %s11, %s663
      %p665 = scmp.lt.s32.totalorder %s27, 1
      %s666 = scalar_select %p665, %s27, 1
      %s667 = smul.addr %s666, 8
      %s668 = smul.addr %s667, 4
      %s669 = scalar_lea.vmem %s12, %s668
      %p670 = scmp.lt.s32.totalorder %s27, 1
      %s671 = scalar_select %p670, %s27, 1
      %s672 = scalar_lea.vmem %s13, %s671
      %p673 = scmp.lt.s32.totalorder %s27, 1
      %s674 = scalar_select %p673, %s27, 1
      %s675 = scalar_lea.vmem %s14, %s674
      %p676 = scmp.lt.s32.totalorder %s27, 1
      %s677 = scalar_select %p676, %s27, 1
      %s678 = scalar_lea.vmem %s15, %s677
      %p680 = scmp.eq.s32.totalorder %s27, 0
      // Predicated region
      $region85: #{bert_forward.2} parent=83 // pred_check
        %p681 = pneg %p680
      $region86: #{bert_forward.2} parent=83 // pred_check_branch
        %683 = sbr.rel (%p681) target = $region88
      $region87: #{bert_forward.2} parent=83 // pred_region
        %v684 = vld [vmem:[%s0] sm:$0xff]
        %v685 = vld [vmem:[%s0 + $0x8] sm:$0xff]
        %v686 = vld [vmem:[%s2] sm:$0x1]
        %v687 = vld [vmem:[%s3] sm:$0x1]
        %vm688 = vcmask 261120
        %v689 = vsel %vm688, %v684, 0.0
        %690 = vadd.xlane.f32.xlu0 %v689
        %v691 = vpop.xlane.xlu0 %690
        %v692 = vsel %vm688, %v685, 0.0
        %693 = vadd.xlane.f32.xlu0 %v692
        %v694 = vpop.xlane.xlu0 %693
        %v695 = vrcp.pop 32.0
        %v696 = vmul.f32 %v691, %v695
        %v697 = vmul.f32 %v694, %v695
        %v698 = vsub.f32 %v684, %v696
        %v699 = vsub.f32 %v685, %v697
        %v700 = vmul.f32 %v698, %v698
        %v701 = vmul.f32 %v699, %v699
        %v702 = vsel %vm688, %v700, 0.0
        %703 = vadd.xlane.f32.xlu0 %v702
        %v704 = vpop.xlane.xlu0 %703
        %v705 = vsel %vm688, %v701, 0.0
        %706 = vadd.xlane.f32.xlu0 %v705
        %v707 = vpop.xlane.xlu0 %706
        %v708 = vmul.f32 %v704, %v695
        %v709 = vmul.f32 %v707, %v695
        %v710 = vadd.f32 %v708, 1e-12
        %v711 = vadd.f32 %v709, 1e-12
        %v712 = vrsqrt.pop %v710
        %v713 = vrsqrt.pop %v711
        %v714 = vmul.f32 %v698, %v712
        %v715 = vmul.f32 %v699, %v713
        %v717 = vlaneseq
        %v718 = vshrl.u32 %v717, 7
        %v719 = vsub.s32 0, %v718
        %v720 = vrot.slane %v686, %v719
        %v722 = vmul.f32 %v714, %v720
        %v723 = vmul.f32 %v715, %v720
        %v725 = vlaneseq
        %v726 = vshrl.u32 %v725, 7
        %v727 = vsub.s32 0, %v726
        %v728 = vrot.slane %v687, %v727
        %v730 = vadd.f32 %v722, %v728
        %v731 = vadd.f32 %v723, %v728
        %732 = vst.msk [vmem:[#allocation2] sm:$0xff] %vm688, %v730
        %733 = vst.msk [vmem:[#allocation2 + $0x8] sm:$0xff] %vm688, %v731
      $region88: #{bert_forward.2} parent=83 // pred_fallthru
        _
      %v734 = vld [vmem:[#allocation2] sm:$0xff]
      %v735 = vld [vmem:[#allocation2 + $0x8] sm:$0xff]
      %v736 = vpack.c.bf16 %v735, %v734
      %v737 = vld [vmem:[%s639] sm:$0xf]
      %v738 = vld [vmem:[%s639 + $0x4] sm:$0xf]
      %v739 = vld [vmem:[%s639 + $0x8] sm:$0xf]
      %v740 = vld [vmem:[%s639 + $0xc] sm:$0xf]
      %v741 = vld [vmem:[%s642] sm:$0x1]
      %v743 = vlaneseq
      %v744 = vshrl.u32 %v743, 7
      %v745 = vsub.s32 0, %v744
      %v746 = vrot.slane %v741, %v745
      %v752 = vunpack.c.l.b16 %v737
      %v753 = vunpack.c.l.b16 %v738
      %v754 = vunpack.c.l.b16 %v739
      %v755 = vunpack.c.l.b16 %v740
      %v756 = vpack.c.b16 %v753, %v752
      %v757 = vpack.c.b16 %v755, %v754
      %vm760 = vcmask 261120
      %v762 = vsel %vm760, %v736, 0
      %764 = vmatprep.subr.bf16.mxu0 0
      %765 = vmatpush1.bf16.msra.mxu0 0
      %766 = vmatprep.subr.bf16.mxu0 0
      %767 = vmatpush1.bf16.msra.mxu0 0
      %768 = vmatprep.subr.bf16.mxu0 0
      %769 = vmatpush1.bf16.msra.mxu0 0
      %770 = vmatprep.subr.bf16.mxu0 0
      %771 = vmatpush1.bf16.msra.mxu0 0
      %772 = vmatprep.subr.bf16.mxu0 0
      %773 = vmatpush1.bf16.msra.mxu0 0
      %774 = vmatprep.subr.bf16.mxu0 0
      %775 = vmatpush1.bf16.msra.mxu0 0
      %776 = vmatprep.subr.bf16.mxu0 0
      %777 = vmatpush1.bf16.msra.mxu0 %v757
      %778 = vmatprep.subr.bf16.mxu0 0
      %779 = vmatpush1.bf16.msra.mxu0 %v756
      %780 = vmatprep.subr.bf16.mxu0 0
      %781 = vmatpush2.bf16.msra.mxu0 0
      %782 = vmatprep.subr.bf16.mxu0 0
      %783 = vmatpush2.bf16.msra.mxu0 0
      %784 = vmatprep.subr.bf16.mxu0 0
      %785 = vmatpush2.bf16.msra.mxu0 0
      %786 = vmatprep.subr.bf16.mxu0 0
      %787 = vmatpush2.bf16.msra.mxu0 0
      %788 = vmatprep.subr.bf16.mxu0 0
      %789 = vmatpush2.bf16.msra.mxu0 0
      %790 = vmatprep.subr.bf16.mxu0 0
      %791 = vmatpush2.bf16.msra.mxu0 0
      %792 = vmatprep.subr.bf16.mxu0 0
      %793 = vmatpush2.bf16.msra.mxu0 0
      %794 = vmatprep.subr.bf16.mxu0 0
      %795 = vmatpush2.bf16.msra.mxu0 0
      %796 = vmatprep.mubr.bf16.mxu0 0
      %797 = vmatmul.mubr.bf16.gmra.mxu0 %v762
      %v798 = vpop.f32.mrf.mxu0
      %v799 = vadd.f32 %v746, %v798
      %v800 = vpop.f32.mrf.mxu0
      %v801 = vpop.f32.mrf.mxu0
      %v802 = vadd.f32 %v746, %v801
      %v803 = vpop.f32.mrf.mxu0
      %804 = vdwg.mxu0
      %v805 = vld [vmem:[%s647] sm:$0xf]
      %v806 = vld [vmem:[%s647 + $0x4] sm:$0xf]
      %v807 = vld [vmem:[%s647 + $0x8] sm:$0xf]
      %v808 = vld [vmem:[%s647 + $0xc] sm:$0xf]
      %v809 = vld [vmem:[%s1] sm:$0x1]
      %v810 = vld [vmem:[%s1 + $0x1] sm:$0x1]
      %v811 = vld [vmem:[%s650] sm:$0x1]
      %v812 = vpack.c.bf16 %v799, %v799
      %v813 = vpack.c.bf16 %v802, %v802
      %815 = vrot.lane.b32.xlu0 %v812, 96
      %v816 = vpop.permute.xlu0 %815
      %vm817 = vcmask 130048
      %v819 = vsel %vm817, %v812, 0
      %v822 = vsel %vm817, %v816, 0
      %824 = vmatprep.subr.bf16.mxu0 0
      %825 = vmatpush1.bf16.xpose.msra.mxu0 0
      %826 = vmatprep.subr.bf16.mxu0 0
      %827 = vmatpush1.bf16.xpose.msra.mxu0 0
      %828 = vmatprep.subr.bf16.mxu0 0
      %829 = vmatpush1.bf16.xpose.msra.mxu0 0
      %830 = vmatprep.subr.bf16.mxu0 0
      %831 = vmatpush1.bf16.xpose.msra.mxu0 0
      %832 = vmatprep.subr.bf16.mxu0 0
      %833 = vmatpush1.bf16.xpose.msra.mxu0 0
      %834 = vmatprep.subr.bf16.mxu0 0
      %835 = vmatpush1.bf16.xpose.msra.mxu0 0
      %836 = vmatprep.subr.bf16.mxu0 0
      %837 = vmatpush1.bf16.xpose.msra.mxu0 0
      %838 = vmatprep.subr.bf16.mxu0 0
      %839 = vmatpush1.bf16.xpose.msra.mxu0 %v822
      %840 = vmatprep.subr.bf16.mxu0 0
      %841 = vmatpush2.bf16.xpose.msra.mxu0 0
      %842 = vmatprep.subr.bf16.mxu0 0
      %843 = vmatpush2.bf16.xpose.msra.mxu0 0
      %844 = vmatprep.subr.bf16.mxu0 0
      %845 = vmatpush2.bf16.xpose.msra.mxu0 0
      %846 = vmatprep.subr.bf16.mxu0 0
      %847 = vmatpush2.bf16.xpose.msra.mxu0 0
      %848 = vmatprep.subr.bf16.mxu0 0
      %849 = vmatpush2.bf16.xpose.msra.mxu0 0
      %850 = vmatprep.subr.bf16.mxu0 0
      %851 = vmatpush2.bf16.xpose.msra.mxu0 0
      %852 = vmatprep.subr.bf16.mxu0 0
      %853 = vmatpush2.bf16.xpose.msra.mxu0 0
      %854 = vmatprep.subr.bf16.mxu0 0
      %855 = vmatpush2.bf16.xpose.msra.mxu0 0
      %856 = vmatprep.mubr.bf16.mxu0 0
      %857 = vmatmul.mubr.bf16.gmra.mxu0 %v819
      %v858 = vpop.f32.mrf.mxu0
      %v859 = vadd.f32 0.0, %v858
      %v860 = vpop.f32.mrf.mxu0
      %v861 = vpop.f32.mrf.mxu0
      %v862 = vpop.f32.mrf.mxu0
      %863 = vdwg.mxu0
      %865 = vrot.lane.b32.xlu0 %v813, 96
      %v866 = vpop.permute.xlu0 %865
      %v868 = vsel %vm817, %v813, 0
      %v871 = vsel %vm817, %v866, 0
      %873 = vmatprep.subr.bf16.mxu0 0
      %874 = vmatpush1.bf16.xpose.msra.mxu0 0
      %875 = vmatprep.subr.bf16.mxu0 0
      %876 = vmatpush1.bf16.xpose.msra.mxu0 0
      %877 = vmatprep.subr.bf16.mxu0 0
      %878 = vmatpush1.bf16.xpose.msra.mxu0 0
      %879 = vmatprep.subr.bf16.mxu0 0
      %880 = vmatpush1.bf16.xpose.msra.mxu0 0
      %881 = vmatprep.subr.bf16.mxu0 0
      %882 = vmatpush1.bf16.xpose.msra.mxu0 0
      %883 = vmatprep.subr.bf16.mxu0 0
      %884 = vmatpush1.bf16.xpose.msra.mxu0 0
      %885 = vmatprep.subr.bf16.mxu0 0
      %886 = vmatpush1.bf16.xpose.msra.mxu0 0
      %887 = vmatprep.subr.bf16.mxu0 0
      %888 = vmatpush1.bf16.xpose.msra.mxu0 %v871
      %889 = vmatprep.subr.bf16.mxu0 0
      %890 = vmatpush2.bf16.xpose.msra.mxu0 0
      %891 = vmatprep.subr.bf16.mxu0 0
      %892 = vmatpush2.bf16.xpose.msra.mxu0 0
      %893 = vmatprep.subr.bf16.mxu0 0
      %894 = vmatpush2.bf16.xpose.msra.mxu0 0
      %895 = vmatprep.subr.bf16.mxu0 0
      %896 = vmatpush2.bf16.xpose.msra.mxu0 0
      %897 = vmatprep.subr.bf16.mxu0 0
      %898 = vmatpush2.bf16.xpose.msra.mxu0 0
      %899 = vmatprep.subr.bf16.mxu0 0
      %900 = vmatpush2.bf16.xpose.msra.mxu0 0
      %901 = vmatprep.subr.bf16.mxu0 0
      %902 = vmatpush2.bf16.xpose.msra.mxu0 0
      %903 = vmatprep.subr.bf16.mxu0 0
      %904 = vmatpush2.bf16.xpose.msra.mxu0 0
      %905 = vmatprep.mubr.bf16.mxu0 0
      %906 = vmatmul.mubr.bf16.gmra.mxu0 %v868
      %v907 = vpop.f32.mrf.mxu0
      %v908 = vadd.f32 0.0, %v907
      %v909 = vpop.f32.mrf.mxu0
      %v910 = vpop.f32.mrf.mxu0
      %v911 = vpop.f32.mrf.mxu0
      %912 = vdwg.mxu0
      %v913 = vmul.f32 %v859, 0.25
      %v914 = vmul.f32 %v908, 0.25
      %v917 = vlaneseq
      %v918 = vshrl.u32 %v917, 7
      %v919 = vsub.s32 0, %v918
      %v920 = vrot.slane %v809, %v919
      %v921 = vlaneseq
      %v922 = vshrl.u32 %v921, 7
      %v923 = vsub.s32 0, %v922
      %v924 = vrot.slane %v810, %v923
      %v927 = vadd.f32 %v913, %v920
      %v928 = vadd.f32 %v914, %v924
      %vm929 = vcmask 64512
      %v930 = vsel %vm929, %v927, -inf
      %931 = vmax.xlane.f32.xlu0 %v930
      %v932 = vpop.xlane.xlu0 %931
      %v933 = vsel %vm929, %v928, -inf
      %934 = vmax.xlane.f32.xlu0 %v933
      %v935 = vpop.xlane.xlu0 %934
      %v936 = vsub.f32 %v927, %v932
      %v937 = vsub.f32 %v928, %v935
      %v938 = vmul.f32 %v936, 1.442695
      %v939 = vpow.pop %v938
      %v940 = vmul.f32 %v937, 1.442695
      %v941 = vpow.pop %v940
      %v942 = vsel %vm929, %v939, 0.0
      %943 = vadd.xlane.f32.xlu0 %v942
      %v944 = vpop.xlane.xlu0 %943
      %v945 = vsel %vm929, %v941, 0.0
      %946 = vadd.xlane.f32.xlu0 %v945
      %v947 = vpop.xlane.xlu0 %946
      %v948 = vrcp.pop %v944
      %v949 = vrcp.pop %v947
      %v950 = vmul.f32 %v939, %v948
      %v951 = vmul.f32 %v941, %v949
      %v952 = vpack.c.bf16 %v950, %v950
      %v953 = vpack.c.bf16 %v951, %v951
      %954 = vrot.lane.b32.xlu0 %v812, 64
      %v955 = vpop.permute.xlu0 %954
      %v957 = vsel %vm929, %v952, 0
      %vm959 = vcmask 1043456
      %v961 = vsel %vm959, %v955, 0
      %963 = vmatprep.subr.bf16.mxu0 0
      %964 = vmatpush1.bf16.msra.mxu0 0
      %965 = vmatprep.subr.bf16.mxu0 0
      %966 = vmatpush1.bf16.msra.mxu0 0
      %967 = vmatprep.subr.bf16.mxu0 0
      %968 = vmatpush1.bf16.msra.mxu0 0
      %969 = vmatprep.subr.bf16.mxu0 0
      %970 = vmatpush1.bf16.msra.mxu0 0
      %971 = vmatprep.subr.bf16.mxu0 0
      %972 = vmatpush1.bf16.msra.mxu0 0
      %973 = vmatprep.subr.bf16.mxu0 0
      %974 = vmatpush1.bf16.msra.mxu0 0
      %975 = vmatprep.subr.bf16.mxu0 0
      %976 = vmatpush1.bf16.msra.mxu0 0
      %977 = vmatprep.subr.bf16.mxu0 0
      %978 = vmatpush1.bf16.msra.mxu0 %v961
      %979 = vmatprep.subr.bf16.mxu0 0
      %980 = vmatpush2.bf16.msra.mxu0 0
      %981 = vmatprep.subr.bf16.mxu0 0
      %982 = vmatpush2.bf16.msra.mxu0 0
      %983 = vmatprep.subr.bf16.mxu0 0
      %984 = vmatpush2.bf16.msra.mxu0 0
      %985 = vmatprep.subr.bf16.mxu0 0
      %986 = vmatpush2.bf16.msra.mxu0 0
      %987 = vmatprep.subr.bf16.mxu0 0
      %988 = vmatpush2.bf16.msra.mxu0 0
      %989 = vmatprep.subr.bf16.mxu0 0
      %990 = vmatpush2.bf16.msra.mxu0 0
      %991 = vmatprep.subr.bf16.mxu0 0
      %992 = vmatpush2.bf16.msra.mxu0 0
      %993 = vmatprep.subr.bf16.mxu0 0
      %994 = vmatpush2.bf16.msra.mxu0 0
      %995 = vmatprep.mubr.bf16.mxu0 0
      %996 = vmatmul.mubr.bf16.gmra.mxu0 %v957
      %v997 = vpop.f32.mrf.mxu0
      %v998 = vadd.f32 0.0, %v997
      %v999 = vpop.f32.mrf.mxu0
      %v1000 = vpop.f32.mrf.mxu0
      %v1001 = vpop.f32.mrf.mxu0
      %1002 = vdwg.mxu0
      %1003 = vrot.lane.b32.xlu0 %v813, 64
      %v1004 = vpop.permute.xlu0 %1003
      %v1006 = vsel %vm929, %v953, 0
      %v1009 = vsel %vm959, %v1004, 0
      %1011 = vmatprep.subr.bf16.mxu0 0
      %1012 = vmatpush1.bf16.msra.mxu0 0
      %1013 = vmatprep.subr.bf16.mxu0 0
      %1014 = vmatpush1.bf16.msra.mxu0 0
      %1015 = vmatprep.subr.bf16.mxu0 0
      %1016 = vmatpush1.bf16.msra.mxu0 0
      %1017 = vmatprep.subr.bf16.mxu0 0
      %1018 = vmatpush1.bf16.msra.mxu0 0
      %1019 = vmatprep.subr.bf16.mxu0 0
      %1020 = vmatpush1.bf16.msra.mxu0 0
      %1021 = vmatprep.subr.bf16.mxu0 0
      %1022 = vmatpush1.bf16.msra.mxu0 0
      %1023 = vmatprep.subr.bf16.mxu0 0
      %1024 = vmatpush1.bf16.msra.mxu0 0
      %1025 = vmatprep.subr.bf16.mxu0 0
      %1026 = vmatpush1.bf16.msra.mxu0 %v1009
      %1027 = vmatprep.subr.bf16.mxu0 0
      %1028 = vmatpush2.bf16.msra.mxu0 0
      %1029 = vmatprep.subr.bf16.mxu0 0
      %1030 = vmatpush2.bf16.msra.mxu0 0
      %1031 = vmatprep.subr.bf16.mxu0 0
      %1032 = vmatpush2.bf16.msra.mxu0 0
      %1033 = vmatprep.subr.bf16.mxu0 0
      %1034 = vmatpush2.bf16.msra.mxu0 0
      %1035 = vmatprep.subr.bf16.mxu0 0
      %1036 = vmatpush2.bf16.msra.mxu0 0
      %1037 = vmatprep.subr.bf16.mxu0 0
      %1038 = vmatpush2.bf16.msra.mxu0 0
      %1039 = vmatprep.subr.bf16.mxu0 0
      %1040 = vmatpush2.bf16.msra.mxu0 0
      %1041 = vmatprep.subr.bf16.mxu0 0
      %1042 = vmatpush2.bf16.msra.mxu0 0
      %1043 = vmatprep.mubr.bf16.mxu0 0
      %1044 = vmatmul.mubr.bf16.gmra.mxu0 %v1006
      %v1045 = vpop.f32.mrf.mxu0
      %v1046 = vadd.f32 0.0, %v1045
      %v1047 = vpop.f32.mrf.mxu0
      %v1048 = vpop.f32.mrf.mxu0
      %v1049 = vpop.f32.mrf.mxu0
      %1050 = vdwg.mxu0
      %v1051 = vpack.c.bf16 %v1046, %v998
      %v1054 = vunpack.c.l.b16 %v805
      %v1055 = vunpack.c.l.b16 %v806
      %v1056 = vpack.c.b16 %v1055, %v1054
      %v1059 = vsel %vm817, %v1051, 0
      %1061 = vmatprep.subr.bf16.mxu0 0
      %1062 = vmatpush1.bf16.msra.mxu0 0
      %1063 = vmatprep.subr.bf16.mxu0 0
      %1064 = vmatpush1.bf16.msra.mxu0 0
      %1065 = vmatprep.subr.bf16.mxu0 0
      %1066 = vmatpush1.bf16.msra.mxu0 0
      %1067 = vmatprep.subr.bf16.mxu0 0
      %1068 = vmatpush1.bf16.msra.mxu0 0
      %1069 = vmatprep.subr.bf16.mxu0 0
      %1070 = vmatpush1.bf16.msra.mxu0 0
      %1071 = vmatprep.subr.bf16.mxu0 0
      %1072 = vmatpush1.bf16.msra.mxu0 0
      %1073 = vmatprep.subr.bf16.mxu0 0
      %1074 = vmatpush1.bf16.msra.mxu0 0
      %1075 = vmatprep.subr.bf16.mxu0 0
      %1076 = vmatpush1.bf16.msra.mxu0 %v1056
      %1077 = vmatprep.subr.bf16.mxu0 0
      %1078 = vmatpush2.bf16.msra.mxu0 0
      %1079 = vmatprep.subr.bf16.mxu0 0
      %1080 = vmatpush2.bf16.msra.mxu0 0
      %1081 = vmatprep.subr.bf16.mxu0 0
      %1082 = vmatpush2.bf16.msra.mxu0 0
      %1083 = vmatprep.subr.bf16.mxu0 0
      %1084 = vmatpush2.bf16.msra.mxu0 0
      %1085 = vmatprep.subr.bf16.mxu0 0
      %1086 = vmatpush2.bf16.msra.mxu0 0
      %1087 = vmatprep.subr.bf16.mxu0 0
      %1088 = vmatpush2.bf16.msra.mxu0 0
      %1089 = vmatprep.subr.bf16.mxu0 0
      %1090 = vmatpush2.bf16.msra.mxu0 0
      %1091 = vmatprep.subr.bf16.mxu0 0
      %1092 = vmatpush2.bf16.msra.mxu0 0
      %1093 = vmatprep.mubr.bf16.mxu0 0
      %1094 = vmatmul.mubr.bf16.gmra.mxu0 %v1059
      %v1095 = vpop.f32.mrf.mxu0
      %v1096 = vadd.f32 0.0, %v1095
      %v1097 = vpop.f32.mrf.mxu0
      %v1098 = vpop.f32.mrf.mxu0
      %v1099 = vadd.f32 0.0, %v1098
      %v1100 = vpop.f32.mrf.mxu0
      %1101 = vdwg.mxu0
      %v1103 = vlaneseq
      %v1104 = vshrl.u32 %v1103, 7
      %v1105 = vsub.s32 0, %v1104
      %v1106 = vrot.slane %v811, %v1105
      %v1108 = vadd.f32 %v1106, %v1096
      %v1109 = vadd.f32 %v1106, %v1099
      %1110 = vrot.lane.b32.xlu0 %v812, 112
      %v1111 = vpop.permute.xlu0 %1110
      %1112 = vrot.lane.b32.xlu0 %v812, 80
      %v1113 = vpop.permute.xlu0 %1112
      %v1115 = vsel %vm817, %v1111, 0
      %v1118 = vsel %vm817, %v1113, 0
      %1120 = vmatprep.subr.bf16.mxu0 0
      %1121 = vmatpush1.bf16.xpose.msra.mxu0 0
      %1122 = vmatprep.subr.bf16.mxu0 0
      %1123 = vmatpush1.bf16.xpose.msra.mxu0 0
      %1124 = vmatprep.subr.bf16.mxu0 0
      %1125 = vmatpush1.bf16.xpose.msra.mxu0 0
      %1126 = vmatprep.subr.bf16.mxu0 0
      %1127 = vmatpush1.bf16.xpose.msra.mxu0 0
      %1128 = vmatprep.subr.bf16.mxu0 0
      %1129 = vmatpush1.bf16.xpose.msra.mxu0 0
      %1130 = vmatprep.subr.bf16.mxu0 0
      %1131 = vmatpush1.bf16.xpose.msra.mxu0 0
      %1132 = vmatprep.subr.bf16.mxu0 0
      %1133 = vmatpush1.bf16.xpose.msra.mxu0 0
      %1134 = vmatprep.subr.bf16.mxu0 0
      %1135 = vmatpush1.bf16.xpose.msra.mxu0 %v1118
      %1136 = vmatprep.subr.bf16.mxu0 0
      %1137 = vmatpush2.bf16.xpose.msra.mxu0 0
      %1138 = vmatprep.subr.bf16.mxu0 0
      %1139 = vmatpush2.bf16.xpose.msra.mxu0 0
      %1140 = vmatprep.subr.bf16.mxu0 0
      %1141 = vmatpush2.bf16.xpose.msra.mxu0 0
      %1142 = vmatprep.subr.bf16.mxu0 0
      %1143 = vmatpush2.bf16.xpose.msra.mxu0 0
      %1144 = vmatprep.subr.bf16.mxu0 0
      %1145 = vmatpush2.bf16.xpose.msra.mxu0 0
      %1146 = vmatprep.subr.bf16.mxu0 0
      %1147 = vmatpush2.bf16.xpose.msra.mxu0 0
      %1148 = vmatprep.subr.bf16.mxu0 0
      %1149 = vmatpush2.bf16.xpose.msra.mxu0 0
      %1150 = vmatprep.subr.bf16.mxu0 0
      %1151 = vmatpush2.bf16.xpose.msra.mxu0 0
      %1152 = vmatprep.mubr.bf16.mxu0 0
      %1153 = vmatmul.mubr.bf16.gmra.mxu0 %v1115
      %v1154 = vpop.f32.mrf.mxu0
      %v1155 = vadd.f32 0.0, %v1154
      %v1156 = vpop.f32.mrf.mxu0
      %v1157 = vpop.f32.mrf.mxu0
      %v1158 = vpop.f32.mrf.mxu0
      %1159 = vdwg.mxu0
      %1160 = vrot.lane.b32.xlu0 %v813, 112
      %v1161 = vpop.permute.xlu0 %1160
      %1162 = vrot.lane.b32.xlu0 %v813, 80
      %v1163 = vpop.permute.xlu0 %1162
      %v1165 = vsel %vm817, %v1161, 0
      %v1168 = vsel %vm817, %v1163, 0
      %1170 = vmatprep.subr.bf16.mxu0 0
      %1171 = vmatpush1.bf16.xpose.msra.mxu0 0
      %1172 = vmatprep.subr.bf16.mxu0 0
      %1173 = vmatpush1.bf16.xpose.msra.mxu0 0
      %1174 = vmatprep.subr.bf16.mxu0 0
      %1175 = vmatpush1.bf16.xpose.msra.mxu0 0
      %1176 = vmatprep.subr.bf16.mxu0 0
      %1177 = vmatpush1.bf16.xpose.msra.mxu0 0
      %1178 = vmatprep.subr.bf16.mxu0 0
      %1179 = vmatpush1.bf16.xpose.msra.mxu0 0
      %1180 = vmatprep.subr.bf16.mxu0 0
      %1181 = vmatpush1.bf16.xpose.msra.mxu0 0
      %1182 = vmatprep.subr.bf16.mxu0 0
      %1183 = vmatpush1.bf16.xpose.msra.mxu0 0
      %1184 = vmatprep.subr.bf16.mxu0 0
      %1185 = vmatpush1.bf16.xpose.msra.mxu0 %v1168
      %1186 = vmatprep.subr.bf16.mxu0 0
      %1187 = vmatpush2.bf16.xpose.msra.mxu0 0
      %1188 = vmatprep.subr.bf16.mxu0 0
      %1189 = vmatpush2.bf16.xpose.msra.mxu0 0
      %1190 = vmatprep.subr.bf16.mxu0 0
      %1191 = vmatpush2.bf16.xpose.msra.mxu0 0
      %1192 = vmatprep.subr.bf16.mxu0 0
      %1193 = vmatpush2.bf16.xpose.msra.mxu0 0
      %1194 = vmatprep.subr.bf16.mxu0 0
      %1195 = vmatpush2.bf16.xpose.msra.mxu0 0
      %1196 = vmatprep.subr.bf16.mxu0 0
      %1197 = vmatpush2.bf16.xpose.msra.mxu0 0
      %1198 = vmatprep.subr.bf16.mxu0 0
      %1199 = vmatpush2.bf16.xpose.msra.mxu0 0
      %1200 = vmatprep.subr.bf16.mxu0 0
      %1201 = vmatpush2.bf16.xpose.msra.mxu0 0
      %1202 = vmatprep.mubr.bf16.mxu0 0
      %1203 = vmatmul.mubr.bf16.gmra.mxu0 %v1165
      %v1204 = vpop.f32.mrf.mxu0
      %v1205 = vadd.f32 0.0, %v1204
      %v1206 = vpop.f32.mrf.mxu0
      %v1207 = vpop.f32.mrf.mxu0
      %v1208 = vpop.f32.mrf.mxu0
      %1209 = vdwg.mxu0
      %v1210 = vmul.f32 %v1155, 0.25
      %v1211 = vmul.f32 %v1205, 0.25
      %v1212 = vadd.f32 %v1210, %v920
      %v1213 = vadd.f32 %v1211, %v924
      %v1214 = vsel %vm929, %v1212, -inf
      %1215 = vmax.xlane.f32.xlu0 %v1214
      %v1216 = vpop.xlane.xlu0 %1215
      %v1217 = vsel %vm929, %v1213, -inf
      %1218 = vmax.xlane.f32.xlu0 %v1217
      %v1219 = vpop.xlane.xlu0 %1218
      %v1220 = vsub.f32 %v1212, %v1216
      %v1221 = vsub.f32 %v1213, %v1219
      %v1222 = vmul.f32 %v1220, 1.442695
      %v1223 = vpow.pop %v1222
      %v1224 = vmul.f32 %v1221, 1.442695
      %v1225 = vpow.pop %v1224
      %v1226 = vsel %vm929, %v1223, 0.0
      %1227 = vadd.xlane.f32.xlu0 %v1226
      %v1228 = vpop.xlane.xlu0 %1227
      %v1229 = vsel %vm929, %v1225, 0.0
      %1230 = vadd.xlane.f32.xlu0 %v1229
      %v1231 = vpop.xlane.xlu0 %1230
      %v1232 = vrcp.pop %v1228
      %v1233 = vrcp.pop %v1231
      %v1234 = vmul.f32 %v1223, %v1232
      %v1235 = vmul.f32 %v1225, %v1233
      %v1236 = vpack.c.bf16 %v1234, %v1234
      %v1237 = vpack.c.bf16 %v1235, %v1235
      %1238 = vrot.lane.b32.xlu0 %v812, 48
      %v1239 = vpop.permute.xlu0 %1238
      %v1241 = vsel %vm929, %v1236, 0
      %v1244 = vsel %vm959, %v1239, 0
      %1246 = vmatprep.subr.bf16.mxu0 0
      %1247 = vmatpush1.bf16.msra.mxu0 0
      %1248 = vmatprep.subr.bf16.mxu0 0
      %1249 = vmatpush1.bf16.msra.mxu0 0
      %1250 = vmatprep.subr.bf16.mxu0 0
      %1251 = vmatpush1.bf16.msra.mxu0 0
      %1252 = vmatprep.subr.bf16.mxu0 0
      %1253 = vmatpush1.bf16.msra.mxu0 0
      %1254 = vmatprep.subr.bf16.mxu0 0
      %1255 = vmatpush1.bf16.msra.mxu0 0
      %1256 = vmatprep.subr.bf16.mxu0 0
      %1257 = vmatpush1.bf16.msra.mxu0 0
      %1258 = vmatprep.subr.bf16.mxu0 0
      %1259 = vmatpush1.bf16.msra.mxu0 0
      %1260 = vmatprep.subr.bf16.mxu0 0
      %1261 = vmatpush1.bf16.msra.mxu0 %v1244
      %1262 = vmatprep.subr.bf16.mxu0 0
      %1263 = vmatpush2.bf16.msra.mxu0 0
      %1264 = vmatprep.subr.bf16.mxu0 0
      %1265 = vmatpush2.bf16.msra.mxu0 0
      %1266 = vmatprep.subr.bf16.mxu0 0
      %1267 = vmatpush2.bf16.msra.mxu0 0
      %1268 = vmatprep.subr.bf16.mxu0 0
      %1269 = vmatpush2.bf16.msra.mxu0 0
      %1270 = vmatprep.subr.bf16.mxu0 0
      %1271 = vmatpush2.bf16.msra.mxu0 0
      %1272 = vmatprep.subr.bf16.mxu0 0
      %1273 = vmatpush2.bf16.msra.mxu0 0
      %1274 = vmatprep.subr.bf16.mxu0 0
      %1275 = vmatpush2.bf16.msra.mxu0 0
      %1276 = vmatprep.subr.bf16.mxu0 0
      %1277 = vmatpush2.bf16.msra.mxu0 0
      %1278 = vmatprep.mubr.bf16.mxu0 0
      %1279 = vmatmul.mubr.bf16.gmra.mxu0 %v1241
      %v1280 = vpop.f32.mrf.mxu0
      %v1281 = vadd.f32 0.0, %v1280
      %v1282 = vpop.f32.mrf.mxu0
      %v1283 = vpop.f32.mrf.mxu0
      %v1284 = vpop.f32.mrf.mxu0
      %1285 = vdwg.mxu0
      %1286 = vrot.lane.b32.xlu0 %v813, 48
      %v1287 = vpop.permute.xlu0 %1286
      %v1289 = vsel %vm929, %v1237, 0
      %v1292 = vsel %vm959, %v1287, 0
      %1294 = vmatprep.subr.bf16.mxu0 0
      %1295 = vmatpush1.bf16.msra.mxu0 0
      %1296 = vmatprep.subr.bf16.mxu0 0
      %1297 = vmatpush1.bf16.msra.mxu0 0
      %1298 = vmatprep.subr.bf16.mxu0 0
      %1299 = vmatpush1.bf16.msra.mxu0 0
      %1300 = vmatprep.subr.bf16.mxu0 0
      %1301 = vmatpush1.bf16.msra.mxu0 0
      %1302 = vmatprep.subr.bf16.mxu0 0
      %1303 = vmatpush1.bf16.msra.mxu0 0
      %1304 = vmatprep.subr.bf16.mxu0 0
      %1305 = vmatpush1.bf16.msra.mxu0 0
      %1306 = vmatprep.subr.bf16.mxu0 0
      %1307 = vmatpush1.bf16.msra.mxu0 0
      %1308 = vmatprep.subr.bf16.mxu0 0
      %1309 = vmatpush1.bf16.msra.mxu0 %v1292
      %1310 = vmatprep.subr.bf16.mxu0 0
      %1311 = vmatpush2.bf16.msra.mxu0 0
      %1312 = vmatprep.subr.bf16.mxu0 0
      %1313 = vmatpush2.bf16.msra.mxu0 0
      %1314 = vmatprep.subr.bf16.mxu0 0
      %1315 = vmatpush2.bf16.msra.mxu0 0
      %1316 = vmatprep.subr.bf16.mxu0 0
      %1317 = vmatpush2.bf16.msra.mxu0 0
      %1318 = vmatprep.subr.bf16.mxu0 0
      %1319 = vmatpush2.bf16.msra.mxu0 0
      %1320 = vmatprep.subr.bf16.mxu0 0
      %1321 = vmatpush2.bf16.msra.mxu0 0
      %1322 = vmatprep.subr.bf16.mxu0 0
      %1323 = vmatpush2.bf16.msra.mxu0 0
      %1324 = vmatprep.subr.bf16.mxu0 0
      %1325 = vmatpush2.bf16.msra.mxu0 0
      %1326 = vmatprep.mubr.bf16.mxu0 0
      %1327 = vmatmul.mubr.bf16.gmra.mxu0 %v1289
      %v1328 = vpop.f32.mrf.mxu0
      %v1329 = vadd.f32 0.0, %v1328
      %v1330 = vpop.f32.mrf.mxu0
      %v1331 = vpop.f32.mrf.mxu0
      %v1332 = vpop.f32.mrf.mxu0
      %1333 = vdwg.mxu0
      %v1334 = vpack.c.bf16 %v1329, %v1281
      %v1337 = vunpack.c.l.b16 %v807
      %v1338 = vunpack.c.l.b16 %v808
      %v1339 = vpack.c.b16 %v1338, %v1337
      %v1342 = vsel %vm817, %v1334, 0
      %1344 = vmatprep.subr.bf16.mxu0 0
      %1345 = vmatpush1.bf16.msra.mxu0 0
      %1346 = vmatprep.subr.bf16.mxu0 0
      %1347 = vmatpush1.bf16.msra.mxu0 0
      %1348 = vmatprep.subr.bf16.mxu0 0
      %1349 = vmatpush1.bf16.msra.mxu0 0
      %1350 = vmatprep.subr.bf16.mxu0 0
      %1351 = vmatpush1.bf16.msra.mxu0 0
      %1352 = vmatprep.subr.bf16.mxu0 0
      %1353 = vmatpush1.bf16.msra.mxu0 0
      %1354 = vmatprep.subr.bf16.mxu0 0
      %1355 = vmatpush1.bf16.msra.mxu0 0
      %1356 = vmatprep.subr.bf16.mxu0 0
      %1357 = vmatpush1.bf16.msra.mxu0 0
      %1358 = vmatprep.subr.bf16.mxu0 0
      %1359 = vmatpush1.bf16.msra.mxu0 %v1339
      %1360 = vmatprep.subr.bf16.mxu0 0
      %1361 = vmatpush2.bf16.msra.mxu0 0
      %1362 = vmatprep.subr.bf16.mxu0 0
      %1363 = vmatpush2.bf16.msra.mxu0 0
      %1364 = vmatprep.subr.bf16.mxu0 0
      %1365 = vmatpush2.bf16.msra.mxu0 0
      %1366 = vmatprep.subr.bf16.mxu0 0
      %1367 = vmatpush2.bf16.msra.mxu0 0
      %1368 = vmatprep.subr.bf16.mxu0 0
      %1369 = vmatpush2.bf16.msra.mxu0 0
      %1370 = vmatprep.subr.bf16.mxu0 0
      %1371 = vmatpush2.bf16.msra.mxu0 0
      %1372 = vmatprep.subr.bf16.mxu0 0
      %1373 = vmatpush2.bf16.msra.mxu0 0
      %1374 = vmatprep.subr.bf16.mxu0 0
      %1375 = vmatpush2.bf16.msra.mxu0 0
      %1376 = vmatprep.mubr.bf16.mxu0 0
      %1377 = vmatmul.mubr.bf16.gmra.mxu0 %v1342
      %v1378 = vpop.f32.mrf.mxu0
      %v1379 = vadd.f32 0.0, %v1378
      %v1380 = vpop.f32.mrf.mxu0
      %v1381 = vpop.f32.mrf.mxu0
      %v1382 = vadd.f32 0.0, %v1381
      %v1383 = vpop.f32.mrf.mxu0
      %1384 = vdwg.mxu0
      %v1385 = vadd.f32 %v1108, %v1379
      %v1386 = vadd.f32 %v1109, %v1382
      %v1387 = vadd.f32 %v1385, %v734
      %v1388 = vadd.f32 %v1386, %v735
      %v1389 = vld [vmem:[%s653] sm:$0x1]
      %v1390 = vld [vmem:[%s656] sm:$0x1]
      %v1391 = vsel %vm760, %v1387, 0.0
      %1392 = vadd.xlane.f32.xlu0 %v1391
      %v1393 = vpop.xlane.xlu0 %1392
      %v1394 = vsel %vm760, %v1388, 0.0
      %1395 = vadd.xlane.f32.xlu0 %v1394
      %v1396 = vpop.xlane.xlu0 %1395
      %v1397 = vrcp.pop 32.0
      %v1398 = vmul.f32 %v1393, %v1397
      %v1399 = vmul.f32 %v1396, %v1397
      %v1400 = vsub.f32 %v1387, %v1398
      %v1401 = vsub.f32 %v1388, %v1399
      %v1402 = vmul.f32 %v1400, %v1400
      %v1403 = vmul.f32 %v1401, %v1401
      %v1404 = vsel %vm760, %v1402, 0.0
      %1405 = vadd.xlane.f32.xlu0 %v1404
      %v1406 = vpop.xlane.xlu0 %1405
      %v1407 = vsel %vm760, %v1403, 0.0
      %1408 = vadd.xlane.f32.xlu0 %v1407
      %v1409 = vpop.xlane.xlu0 %1408
      %v1410 = vmul.f32 %v1406, %v1397
      %v1411 = vmul.f32 %v1409, %v1397
      %v1412 = vadd.f32 %v1410, 1e-12
      %v1413 = vadd.f32 %v1411, 1e-12
      %v1414 = vrsqrt.pop %v1412
      %v1415 = vrsqrt.pop %v1413
      %v1416 = vmul.f32 %v1400, %v1414
      %v1417 = vmul.f32 %v1401, %v1415
      %v1419 = vlaneseq
      %v1420 = vshrl.u32 %v1419, 7
      %v1421 = vsub.s32 0, %v1420
      %v1422 = vrot.slane %v1389, %v1421
      %v1424 = vmul.f32 %v1416, %v1422
      %v1425 = vmul.f32 %v1417, %v1422
      %v1427 = vlaneseq
      %v1428 = vshrl.u32 %v1427, 7
      %v1429 = vsub.s32 0, %v1428
      %v1430 = vrot.slane %v1390, %v1429
      %v1432 = vadd.f32 %v1424, %v1430
      %v1433 = vadd.f32 %v1425, %v1430
      %v1434 = vpack.c.bf16 %v1433, %v1432
      %v1435 = vld [vmem:[%s661] sm:$0xf]
      %v1436 = vld [vmem:[%s661 + $0x4] sm:$0xf]
      %v1437 = vld [vmem:[%s661 + $0x8] sm:$0xf]
      %v1438 = vld [vmem:[%s661 + $0xc] sm:$0xf]
      %v1439 = vld [vmem:[%s664] sm:$0x1]
      %v1441 = vlaneseq
      %v1442 = vshrl.u32 %v1441, 7
      %v1443 = vsub.s32 0, %v1442
      %v1444 = vrot.slane %v1439, %v1443
      %v1450 = vunpack.c.l.b16 %v1435
      %v1451 = vunpack.c.l.b16 %v1436
      %v1452 = vunpack.c.l.b16 %v1437
      %v1453 = vunpack.c.l.b16 %v1438
      %v1454 = vpack.c.b16 %v1451, %v1450
      %v1455 = vpack.c.b16 %v1453, %v1452
      %v1459 = vsel %vm760, %v1434, 0
      %1461 = vmatprep.subr.bf16.mxu0 0
      %1462 = vmatpush1.bf16.msra.mxu0 0
      %1463 = vmatprep.subr.bf16.mxu0 0
      %1464 = vmatpush1.bf16.msra.mxu0 0
      %1465 = vmatprep.subr.bf16.mxu0 0
      %1466 = vmatpush1.bf16.msra.mxu0 0
      %1467 = vmatprep.subr.bf16.mxu0 0
      %1468 = vmatpush1.bf16.msra.mxu0 0
      %1469 = vmatprep.subr.bf16.mxu0 0
      %1470 = vmatpush1.bf16.msra.mxu0 0
      %1471 = vmatprep.subr.bf16.mxu0 0
      %1472 = vmatpush1.bf16.msra.mxu0 0
      %1473 = vmatprep.subr.bf16.mxu0 0
      %1474 = vmatpush1.bf16.msra.mxu0 %v1455
      %1475 = vmatprep.subr.bf16.mxu0 0
      %1476 = vmatpush1.bf16.msra.mxu0 %v1454
      %1477 = vmatprep.subr.bf16.mxu0 0
      %1478 = vmatpush2.bf16.msra.mxu0 0
      %1479 = vmatprep.subr.bf16.mxu0 0
      %1480 = vmatpush2.bf16.msra.mxu0 0
      %1481 = vmatprep.subr.bf16.mxu0 0
      %1482 = vmatpush2.bf16.msra.mxu0 0
      %1483 = vmatprep.subr.bf16.mxu0 0
      %1484 = vmatpush2.bf16.msra.mxu0 0
      %1485 = vmatprep.subr.bf16.mxu0 0
      %1486 = vmatpush2.bf16.msra.mxu0 0
      %1487 = vmatprep.subr.bf16.mxu0 0
      %1488 = vmatpush2.bf16.msra.mxu0 0
      %1489 = vmatprep.subr.bf16.mxu0 0
      %1490 = vmatpush2.bf16.msra.mxu0 0
      %1491 = vmatprep.subr.bf16.mxu0 0
      %1492 = vmatpush2.bf16.msra.mxu0 0
      %1493 = vmatprep.mubr.bf16.mxu0 0
      %1494 = vmatmul.mubr.bf16.gmra.mxu0 %v1459
      %v1495 = vpop.f32.mrf.mxu0
      %v1496 = vadd.f32 %v1444, %v1495
      %v1497 = vpop.f32.mrf.mxu0
      %v1498 = vpop.f32.mrf.mxu0
      %v1499 = vadd.f32 %v1444, %v1498
      %v1500 = vpop.f32.mrf.mxu0
      %1501 = vdwg.mxu0
      %v1502 = vmul.f32 %v1496, %v1496
      %v1503 = vmul.f32 %v1499, %v1499
      %v1504 = vmul.f32 %v1496, %v1502
      %v1505 = vmul.f32 %v1499, %v1503
      %v1506 = vmul.f32 %v1504, 0.044715
      %v1507 = vmul.f32 %v1505, 0.044715
      %v1508 = vadd.f32 %v1496, %v1506
      %v1509 = vadd.f32 %v1499, %v1507
      %v1510 = vmul.f32 %v1508, 0.7978846
      %v1511 = vmul.f32 %v1509, 0.7978846
      %v1512 = vtanh.pop %v1510
      %v1513 = vtanh.pop %v1511
      %v1514 = vadd.f32 %v1512, 1.0
      %v1515 = vadd.f32 %v1513, 1.0
      %v1516 = vmul.f32 %v1514, 0.5
      %v1517 = vmul.f32 %v1515, 0.5
      %v1518 = vmul.f32 %v1496, %v1516
      %v1519 = vmul.f32 %v1499, %v1517
      %v1520 = vpack.c.bf16 %v1519, %v1518
      %v1521 = vld [vmem:[%s669] sm:$0xf]
      %v1522 = vld [vmem:[%s669 + $0x4] sm:$0xf]
      %v1523 = vld [vmem:[%s669 + $0x8] sm:$0xf]
      %v1524 = vld [vmem:[%s669 + $0xc] sm:$0xf]
      %v1525 = vld [vmem:[%s669 + $0x10] sm:$0xf]
      %v1526 = vld [vmem:[%s669 + $0x14] sm:$0xf]
      %v1527 = vld [vmem:[%s669 + $0x18] sm:$0xf]
      %v1528 = vld [vmem:[%s669 + $0x1c] sm:$0xf]
      %v1529 = vld [vmem:[%s672] sm:$0x1]
      %v1531 = vlaneseq
      %v1532 = vshrl.u32 %v1531, 7
      %v1533 = vsub.s32 0, %v1532
      %v1534 = vrot.slane %v1529, %v1533
      %v1544 = vunpack.c.l.b16 %v1521
      %v1545 = vunpack.c.l.b16 %v1522
      %v1546 = vunpack.c.l.b16 %v1523
      %v1547 = vunpack.c.l.b16 %v1524
      %v1548 = vunpack.c.l.b16 %v1525
      %v1549 = vunpack.c.l.b16 %v1526
      %v1550 = vunpack.c.l.b16 %v1527
      %v1551 = vunpack.c.l.b16 %v1528
      %v1552 = vpack.c.b16 %v1545, %v1544
      %v1553 = vpack.c.b16 %v1547, %v1546
      %v1554 = vpack.c.b16 %v1549, %v1548
      %v1555 = vpack.c.b16 %v1551, %v1550
      %vm1560 = vcmask 523264
      %v1562 = vsel %vm1560, %v1520, 0
      %1564 = vmatprep.subr.bf16.mxu0 0
      %1565 = vmatpush1.bf16.msra.mxu0 0
      %1566 = vmatprep.subr.bf16.mxu0 0
      %1567 = vmatpush1.bf16.msra.mxu0 0
      %1568 = vmatprep.subr.bf16.mxu0 0
      %1569 = vmatpush1.bf16.msra.mxu0 0
      %1570 = vmatprep.subr.bf16.mxu0 0
      %1571 = vmatpush1.bf16.msra.mxu0 0
      %1572 = vmatprep.subr.bf16.mxu0 0
      %1573 = vmatpush1.bf16.msra.mxu0 %v1555
      %1574 = vmatprep.subr.bf16.mxu0 0
      %1575 = vmatpush1.bf16.msra.mxu0 %v1554
      %1576 = vmatprep.subr.bf16.mxu0 0
      %1577 = vmatpush1.bf16.msra.mxu0 %v1553
      %1578 = vmatprep.subr.bf16.mxu0 0
      %1579 = vmatpush1.bf16.msra.mxu0 %v1552
      %1580 = vmatprep.subr.bf16.mxu0 0
      %1581 = vmatpush2.bf16.msra.mxu0 0
      %1582 = vmatprep.subr.bf16.mxu0 0
      %1583 = vmatpush2.bf16.msra.mxu0 0
      %1584 = vmatprep.subr.bf16.mxu0 0
      %1585 = vmatpush2.bf16.msra.mxu0 0
      %1586 = vmatprep.subr.bf16.mxu0 0
      %1587 = vmatpush2.bf16.msra.mxu0 0
      %1588 = vmatprep.subr.bf16.mxu0 0
      %1589 = vmatpush2.bf16.msra.mxu0 0
      %1590 = vmatprep.subr.bf16.mxu0 0
      %1591 = vmatpush2.bf16.msra.mxu0 0
      %1592 = vmatprep.subr.bf16.mxu0 0
      %1593 = vmatpush2.bf16.msra.mxu0 0
      %1594 = vmatprep.subr.bf16.mxu0 0
      %1595 = vmatpush2.bf16.msra.mxu0 0
      %1596 = vmatprep.mubr.bf16.mxu0 0
      %1597 = vmatmul.mubr.bf16.gmra.mxu0 %v1562
      %v1598 = vpop.f32.mrf.mxu0
      %v1599 = vadd.f32 %v1534, %v1598
      %v1600 = vpop.f32.mrf.mxu0
      %v1601 = vpop.f32.mrf.mxu0
      %v1602 = vadd.f32 %v1534, %v1601
      %v1603 = vpop.f32.mrf.mxu0
      %1604 = vdwg.mxu0
      %v1605 = vadd.f32 %v1599, %v1432
      %v1606 = vadd.f32 %v1602, %v1433
      %v1607 = vld [vmem:[%s675] sm:$0x1]
      %v1608 = vld [vmem:[%s678] sm:$0x1]
      %v1609 = vsel %vm760, %v1605, 0.0
      %1610 = vadd.xlane.f32.xlu0 %v1609
      %v1611 = vpop.xlane.xlu0 %1610
      %v1612 = vsel %vm760, %v1606, 0.0
      %1613 = vadd.xlane.f32.xlu0 %v1612
      %v1614 = vpop.xlane.xlu0 %1613
      %v1615 = vmul.f32 %v1611, %v1397
      %v1616 = vmul.f32 %v1614, %v1397
      %v1617 = vsub.f32 %v1605, %v1615
      %v1618 = vsub.f32 %v1606, %v1616
      %v1619 = vmul.f32 %v1617, %v1617
      %v1620 = vmul.f32 %v1618, %v1618
      %v1621 = vsel %vm760, %v1619, 0.0
      %1622 = vadd.xlane.f32.xlu0 %v1621
      %v1623 = vpop.xlane.xlu0 %1622
      %v1624 = vsel %vm760, %v1620, 0.0
      %1625 = vadd.xlane.f32.xlu0 %v1624
      %v1626 = vpop.xlane.xlu0 %1625
      %v1627 = vmul.f32 %v1623, %v1397
      %v1628 = vmul.f32 %v1626, %v1397
      %v1629 = vadd.f32 %v1627, 1e-12
      %v1630 = vadd.f32 %v1628, 1e-12
      %v1631 = vrsqrt.pop %v1629
      %v1632 = vrsqrt.pop %v1630
      %v1633 = vmul.f32 %v1617, %v1631
      %v1634 = vmul.f32 %v1618, %v1632
      %v1636 = vlaneseq
      %v1637 = vshrl.u32 %v1636, 7
      %v1638 = vsub.s32 0, %v1637
      %v1639 = vrot.slane %v1607, %v1638
      %v1641 = vmul.f32 %v1633, %v1639
      %v1642 = vmul.f32 %v1634, %v1639
      %v1644 = vlaneseq
      %v1645 = vshrl.u32 %v1644, 7
      %v1646 = vsub.s32 0, %v1645
      %v1647 = vrot.slane %v1608, %v1646
      %v1649 = vadd.f32 %v1641, %v1647
      %v1650 = vadd.f32 %v1642, %v1647
      %1651 = vst.msk [vmem:[#allocation2] sm:$0xff] %vm760, %v1649
      %1652 = vst.msk [vmem:[#allocation2 + $0x8] sm:$0xff] %vm760, %v1650
      %p1653 = scmp.eq.s32.totalorder %s27, 1
      // Predicated region
      $region89: #{bert_forward.2} parent=83 // pred_check
        %p1654 = pneg %p1653
      $region90: #{bert_forward.2} parent=83 // pred_check_branch
        %1656 = sbr.rel (%p1654) target = $region92
      $region91: #{bert_forward.2} parent=83 // pred_region
        %1657 = vst.msk [vmem:[%s16] sm:$0xff] %vm760, %v1649
        %1658 = vst.msk [vmem:[%s16 + $0x8] sm:$0xff] %vm760, %v1650
      $region92: #{bert_forward.2} parent=83 // pred_fallthru
        _
      // Predicated region
      $region93: #{bert_forward.2} parent=83 // pred_check
        %p1659 = pneg %p436
      $region94: #{bert_forward.2} parent=83 // pred_check_branch
        %1661 = sbr.rel (%p1659) target = $region96
      $region95: #{bert_forward.2} parent=83 // pred_region
        _
      $region96: #{bert_forward.2} parent=83 // pred_fallthru
        _
      // Predicated region
      $region97: #{bert_forward.2} parent=83 // pred_check
        %p1662 = pneg %p436
      $region98: #{bert_forward.2} parent=83 // pred_check_branch
        %1664 = sbr.rel (%p1662) target = $region100
      $region99: #{bert_forward.2} parent=83 // pred_region
        _
      $region100: #{bert_forward.2} parent=83 // pred_fallthru
        _
    $region84: #{bert_forward.2} parent=5 // pred_fallthru
      _
    %p1665 = scmp.le.s32.totalorder 2, %s22
    // Predicated region
    $region101: #{bert_forward.2} parent=5 // pred_check
      %p1666 = pneg %p1665
    $region102: #{bert_forward.2} parent=5 // pred_check_branch
      %1668 = sbr.rel (%p1666) target = $region104
    $region103: #{bert_forward.2} parent=5 // pred_region
      %s1669 = ssub.s32 %s22, 2
    $region104: #{bert_forward.2} parent=5 // pred_fallthru
      _
  $region6: #{bert_forward.2} parent=0 // loop_footer
    %s26 = sadd.s32 1, %s22
  $region7: #{bert_forward.2} parent=0 // loop_footer_branch
    %21 = sbr.rel target = $region3
  $region8: #{bert_forward.2} parent=0 // loop_exit
    _

</llo_original>
